<compile_context>
chip_gen: v6e
topology: v6e:2x2x1
jax: 0.10.0
libtpu: 0.0.40
codegen_flags: <defaults>
</compile_context>

<pallas_src>
import functools
import math

import jax
import jax.numpy as jnp
from jax.experimental import pallas as pl
from jax.experimental.pallas import tpu as pltpu


# ----------------------------------------------------------------------------
# Tiling helpers (row tiles are multiples of 8, lane tiles multiples of 128,
# or the full dimension when it is small / indivisible).
# ----------------------------------------------------------------------------
def _row_tile(m, pref=256):
    if m <= pref:
        return m
    t = pref
    while t >= 8:
        if m % t == 0:
            return t
        t //= 2
    return m


def _lane_tile(n, pref=512):
    if n <= pref:
        return n
    t = (pref // 128) * 128
    while t >= 128:
        if n % t == 0:
            return t
        t -= 128
    return n


# ----------------------------------------------------------------------------
# Generic tiled linear (used for the decoder):  y = x @ w + b
# ----------------------------------------------------------------------------
def _matmul_kernel(x_ref, w_ref, b_ref, o_ref, acc_ref):
    k = pl.program_id(2)

    @pl.when(k == 0)
    def _():
        acc_ref[...] = jnp.zeros_like(acc_ref)

    acc_ref[...] += jnp.dot(
        x_ref[...].astype(jnp.bfloat16), w_ref[...],
        preferred_element_type=jnp.float32)

    @pl.when(k == pl.num_programs(2) - 1)
    def _():
        o_ref[...] = (acc_ref[...] + b_ref[...]).astype(o_ref.dtype)


def linear(x, w, b, out_dtype=jnp.float32):
    """x: (M, K) bf16/f32, w: (K, N) bf16, b: (1, N) f32 -> (M, N)."""
    M, K = x.shape
    N = w.shape[1]
    tm, tn, tk = _row_tile(M, 256), _lane_tile(N, 256), _lane_tile(K, 512)
    return pl.pallas_call(
        _matmul_kernel,
        out_shape=jax.ShapeDtypeStruct((M, N), out_dtype),
        grid=(M // tm, N // tn, K // tk),
        in_specs=[
            pl.BlockSpec((tm, tk), lambda i, j, k: (i, k)),
            pl.BlockSpec((tk, tn), lambda i, j, k: (k, j)),
            pl.BlockSpec((1, tn), lambda i, j, k: (0, j)),
        ],
        out_specs=pl.BlockSpec((tm, tn), lambda i, j, k: (i, j)),
        scratch_shapes=[pltpu.VMEM((tm, tn), jnp.float32)],
        compiler_params=pltpu.CompilerParams(
            dimension_semantics=("parallel", "parallel", "arbitrary")),
    )(x, w, b)


# ----------------------------------------------------------------------------
# QKV projection written directly in head-split layout.
#   x: (M, D) bf16, w3: (3*nhead, D, Dh) bf16, b3: (3*nhead, 1, Dh) f32
#   -> (3*nhead, M, Dh) bf16
# The x block index is constant over the head-group axis, so x stays resident
# in VMEM across the whole j sweep (read from HBM exactly once).
# ----------------------------------------------------------------------------
def _qkv_proj_kernel(x_ref, w_ref, b_ref, o_ref):
    acc = jnp.dot(x_ref[...].astype(jnp.bfloat16), w_ref[0],
                  preferred_element_type=jnp.float32)
    o_ref[0] = (acc + b_ref[0]).astype(o_ref.dtype)


def qkv_proj(x, w3, b3):
    M, D = x.shape
    J, _, Dh = w3.shape            # J = 3 * nhead
    tm = _row_tile(M, 256)
    return pl.pallas_call(
        _qkv_proj_kernel,
        out_shape=jax.ShapeDtypeStruct((J, M, Dh), jnp.bfloat16),
        grid=(M // tm, J),
        in_specs=[
            pl.BlockSpec((tm, D), lambda i, j: (i, 0)),
            pl.BlockSpec((1, D, Dh), lambda i, j: (j, 0, 0)),
            pl.BlockSpec((1, 1, Dh), lambda i, j: (j, 0, 0)),
        ],
        out_specs=pl.BlockSpec((1, tm, Dh), lambda i, j: (j, i, 0)),
        compiler_params=pltpu.CompilerParams(
            dimension_semantics=("parallel", "parallel")),
    )(x, w3, b3)


# ----------------------------------------------------------------------------
# Causal multi-head attention on the head-split slab.
#   qkv_heads: (3*nhead, B, S, Dh) bf16 -> (nhead, B, S, Dh) bf16
# Grid = (B, nhead): exactly one (S, S) f32 score block live at a time.
# ----------------------------------------------------------------------------
def _mha_kernel(q_ref, k_ref, v_ref, o_ref, *, scale):
    q = q_ref[0, 0]                                        # (S, Dh) bf16
    k = k_ref[0, 0]
    v = v_ref[0, 0]
    S = q.shape[0]
    s = jax.lax.dot_general(
        q, k, (((1,), (1,)), ((), ())),
        preferred_element_type=jnp.float32) * scale        # (S, S) f32
    row = jax.lax.broadcasted_iota(jnp.int32, (S, S), 0)
    col = jax.lax.broadcasted_iota(jnp.int32, (S, S), 1)
    s = jnp.where(col > row, -jnp.inf, s)
    # TODO(synk): src_key_padding_mask is not applied (demo batch has no padding).
    # TODO(synk): for S >= ~2k, tile the KV axis with an online softmax (flash style).
    m = jnp.max(s, axis=-1, keepdims=True)
    p = jnp.exp(s - m)
    l = jnp.sum(p, axis=-1, keepdims=True)
    p = p * pl.reciprocal(l, approx=True)
    o_ref[0, 0] = jnp.dot(p.astype(jnp.bfloat16), v,
                          preferred_element_type=jnp.float32).astype(o_ref.dtype)


def causal_mha(qkv_heads, nhead):
    J, B, S, Dh = qkv_heads.shape
    scale = 1.0 / math.sqrt(Dh)
    return pl.pallas_call(
        functools.partial(_mha_kernel, scale=scale),
        out_shape=jax.ShapeDtypeStruct((nhead, B, S, Dh), jnp.bfloat16),
        grid=(B, nhead),
        in_specs=[
            pl.BlockSpec((1, 1, S, Dh), lambda b, h: (h, b, 0, 0)),
            pl.BlockSpec((1, 1, S, Dh), lambda b, h: (nhead + h, b, 0, 0)),
            pl.BlockSpec((1, 1, S, Dh), lambda b, h: (2 * nhead + h, b, 0, 0)),
        ],
        out_specs=pl.BlockSpec((1, 1, S, Dh), lambda b, h: (h, b, 0, 0)),
        compiler_params=pltpu.CompilerParams(
            dimension_semantics=("parallel", "parallel")),
    )(qkv_heads, qkv_heads, qkv_heads)


# ----------------------------------------------------------------------------
# Attention out-projection with head merge folded into a grid contraction,
# plus fused residual-add + LayerNorm epilogue:
#   out = LayerNorm(res + sum_h attn[h] @ w[h] + b) * gamma + beta
#   attn: (nhead, M, Dh) bf16, w3: (nhead, Dh, D) bf16 -> (M, D) bf16
# ----------------------------------------------------------------------------
def _outproj_res_ln_kernel(x_ref, w_ref, b_ref, r_ref, g_ref, bt_ref,
                           o_ref, acc_ref, *, eps):
    h = pl.program_id(1)

    @pl.when(h == 0)
    def _():
        acc_ref[...] = jnp.zeros_like(acc_ref)

    acc_ref[...] += jnp.dot(x_ref[0], w_ref[0],
                            preferred_element_type=jnp.float32)

    @pl.when(h == pl.num_programs(1) - 1)
    def _():
        y = acc_ref[...] + b_ref[...] + r_ref[...].astype(jnp.float32)
        mu = jnp.mean(y, axis=-1, keepdims=True)
        var = jnp.mean((y - mu) ** 2, axis=-1, keepdims=True)
        yhat = (y - mu) * jax.lax.rsqrt(var + eps)
        o_ref[...] = (yhat * g_ref[...] + bt_ref[...]).astype(o_ref.dtype)


def outproj_res_ln(attn, w3, b, res, gamma, beta, eps=1e-5):
    H, M, Dh = attn.shape
    D = w3.shape[2]
    tm = _row_tile(M, 256)
    return pl.pallas_call(
        functools.partial(_outproj_res_ln_kernel, eps=eps),
        out_shape=jax.ShapeDtypeStruct((M, D), jnp.bfloat16),
        grid=(M // tm, H),
        in_specs=[
            pl.BlockSpec((1, tm, Dh), lambda i, h: (h, i, 0)),
            pl.BlockSpec((1, Dh, D), lambda i, h: (h, 0, 0)),
            pl.BlockSpec((1, D), lambda i, h: (0, 0)),
            pl.BlockSpec((tm, D), lambda i, h: (i, 0)),
            pl.BlockSpec((1, D), lambda i, h: (0, 0)),
            pl.BlockSpec((1, D), lambda i, h: (0, 0)),
        ],
        out_specs=pl.BlockSpec((tm, D), lambda i, h: (i, 0)),
        scratch_shapes=[pltpu.VMEM((tm, D), jnp.float32)],
        compiler_params=pltpu.CompilerParams(
            dimension_semantics=("parallel", "arbitrary")),
    )(attn, w3, b, res, gamma, beta)


# ----------------------------------------------------------------------------
# Fused FFN + residual + LayerNorm, dim_ff tiled on the grid:
#   out = LayerNorm(x + relu(x@w1 + b1) @ w2 + b2) * gamma + beta
# The (tm, tf) ReLU intermediate lives only in VMEM; the second matmul
# accumulates into a (tm, D) f32 scratch.
# ----------------------------------------------------------------------------
def _ffn_res_ln_kernel(x_ref, w1_ref, b1_ref, w2_ref, b2_ref, g_ref, bt_ref,
                       o_ref, acc_ref, *, eps):
    f = pl.program_id(1)

    @pl.when(f == 0)
    def _():
        acc_ref[...] = jnp.zeros_like(acc_ref)

    h = jnp.dot(x_ref[...].astype(jnp.bfloat16), w1_ref[...],
                preferred_element_type=jnp.float32) + b1_ref[...]
    h = jnp.maximum(h, 0.0)
    acc_ref[...] += jnp.dot(h.astype(jnp.bfloat16), w2_ref[...],
                            preferred_element_type=jnp.float32)

    @pl.when(f == pl.num_programs(1) - 1)
    def _():
        y = acc_ref[...] + b2_ref[...] + x_ref[...].astype(jnp.float32)
        mu = jnp.mean(y, axis=-1, keepdims=True)
        var = jnp.mean((y - mu) ** 2, axis=-1, keepdims=True)
        yhat = (y - mu) * jax.lax.rsqrt(var + eps)
        o_ref[...] = (yhat * g_ref[...] + bt_ref[...]).astype(o_ref.dtype)


def ffn_res_ln(x, w1, b1, w2, b2, gamma, beta, eps=1e-5):
    M, D = x.shape
    F = w1.shape[1]
    tm = _row_tile(M, 256)
    tf = _lane_tile(F, 512)
    return pl.pallas_call(
        functools.partial(_ffn_res_ln_kernel, eps=eps),
        out_shape=jax.ShapeDtypeStruct((M, D), jnp.bfloat16),
        grid=(M // tm, F // tf),
        in_specs=[
            pl.BlockSpec((tm, D), lambda i, f: (i, 0)),
            pl.BlockSpec((D, tf), lambda i, f: (0, f)),
            pl.BlockSpec((1, tf), lambda i, f: (0, f)),
            pl.BlockSpec((tf, D), lambda i, f: (f, 0)),
            pl.BlockSpec((1, D), lambda i, f: (0, 0)),
            pl.BlockSpec((1, D), lambda i, f: (0, 0)),
            pl.BlockSpec((1, D), lambda i, f: (0, 0)),
        ],
        out_specs=pl.BlockSpec((tm, D), lambda i, f: (i, 0)),
        scratch_shapes=[pltpu.VMEM((tm, D), jnp.float32)],
        compiler_params=pltpu.CompilerParams(
            dimension_semantics=("parallel", "arbitrary")),
    )(x, w1, b1, w2, b2, gamma, beta)


# ----------------------------------------------------------------------------
# Model glue: parameters, positional encoding, layer / forward wiring
# ----------------------------------------------------------------------------
def positional_encoding(max_len, D):
    pos = jnp.arange(max_len, dtype=jnp.float32)[:, None]
    div = jnp.exp(jnp.arange(0, D, 2, dtype=jnp.float32)
                  * (-math.log(10000.0) / D))
    pe = jnp.zeros((max_len, D), jnp.float32)
    pe = pe.at[:, 0::2].set(jnp.sin(pos * div))
    pe = pe.at[:, 1::2].set(jnp.cos(pos * div))
    return pe


def xavier_uniform(key, shape):
    fan_in, fan_out = shape[0], shape[1]
    limit = math.sqrt(6.0 / (fan_in + fan_out))
    return jax.random.uniform(key, shape, jnp.float32, -limit, limit)


def init_params(key, vocab_size, embed_dim, nhead, dim_ff, nlayers,
                max_len=2048):
    Dh = embed_dim // nhead
    vocab_pad = max(128, ((vocab_size + 127) // 128) * 128)
    keys = jax.random.split(key, 2 + 4 * nlayers)

    dec_w = xavier_uniform(keys[1], (embed_dim, vocab_size))
    dec_w = jnp.pad(dec_w, ((0, 0), (0, vocab_pad - vocab_size)))

    params = {
        "embed": jax.random.uniform(keys[0], (vocab_size, embed_dim),
                                    jnp.float32, -0.1, 0.1),
        "pos_enc": positional_encoding(max_len, embed_dim),
        "dec_w": dec_w.astype(jnp.bfloat16),
        "dec_b": jnp.zeros((1, vocab_pad), jnp.float32),
        "layers": [],
    }
    for l in range(nlayers):
        k = keys[2 + 4 * l: 2 + 4 * (l + 1)]
        # in_proj (D, 3D) reorganized once at init into head-split (3*nhead, D, Dh).
        in_w = xavier_uniform(k[0], (embed_dim, 3 * embed_dim))
        in_w3 = (in_w.reshape(embed_dim, 3, nhead, Dh)
                 .transpose(1, 2, 0, 3).reshape(3 * nhead, embed_dim, Dh))
        # out_proj (D, D): rows grouped by head -> (nhead, Dh, D) (pure reshape).
        out_w = xavier_uniform(k[1], (embed_dim, embed_dim))
        out_w3 = out_w.reshape(nhead, Dh, embed_dim)
        params["layers"].append({
            "in_w3": in_w3.astype(jnp.bfloat16),
            "in_b3": jnp.zeros((3 * nhead, 1, Dh), jnp.float32),
            "out_w3": out_w3.astype(jnp.bfloat16),
            "out_b": jnp.zeros((1, embed_dim), jnp.float32),
            "ffn_w1": xavier_uniform(k[2], (embed_dim, dim_ff)).astype(jnp.bfloat16),
            "ffn_b1": jnp.zeros((1, dim_ff), jnp.float32),
            "ffn_w2": xavier_uniform(k[3], (dim_ff, embed_dim)).astype(jnp.bfloat16),
            "ffn_b2": jnp.zeros((1, embed_dim), jnp.float32),
            "ln1_g": jnp.ones((1, embed_dim), jnp.float32),
            "ln1_b": jnp.zeros((1, embed_dim), jnp.float32),
            "ln2_g": jnp.ones((1, embed_dim), jnp.float32),
            "ln2_b": jnp.zeros((1, embed_dim), jnp.float32),
        })
    return params


def encoder_layer(x, lp, B, S, nhead):
    """One post-LN TransformerEncoderLayer (batch_first, ReLU FFN, causal MHA).
    x: (M, D) bf16 with M = B * S."""
    M, D = x.shape
    Dh = D // nhead

    qkv = qkv_proj(x, lp["in_w3"], lp["in_b3"])                 # (3*nhead, M, Dh)
    attn = causal_mha(qkv.reshape(3 * nhead, B, S, Dh), nhead)  # (nhead, B, S, Dh)
    x1 = outproj_res_ln(attn.reshape(nhead, M, Dh), lp["out_w3"], lp["out_b"],
                        x, lp["ln1_g"], lp["ln1_b"])            # (M, D) bf16
    x2 = ffn_res_ln(x1, lp["ffn_w1"], lp["ffn_b1"], lp["ffn_w2"], lp["ffn_b2"],
                    lp["ln2_g"], lp["ln2_b"])                   # (M, D) bf16
    return x2


def model_forward(batch_tokens, pad_mask, params, nhead):
    """Mirrors Model.forward after tokenization/collation.
    batch_tokens: (B, L) int32; pad_mask: (B, L) bool.
    Returns (logits (B, L-1, V), targets (B, L-1), target_pad_mask (B, L-1))."""
    inputs = batch_tokens[:, :-1]
    targets = batch_tokens[:, 1:]
    target_pad_mask = pad_mask[:, 1:]

    B, S = inputs.shape
    vocab_size = params["embed"].shape[0]

    # Pad the sequence to a multiple of 8 so all row tiles are sublane-aligned;
    # causal masking guarantees real positions never see the padded tail.
    S_pad = ((S + 7) // 8) * 8
    inputs_p = jnp.pad(inputs, ((0, 0), (0, S_pad - S))) if S_pad != S else inputs

    x = jnp.take(params["embed"], inputs_p, axis=0)        # (B, S_pad, D) f32 (glue)
    D = x.shape[-1]
    x = x + params["pos_enc"][:S_pad][None]
    # TODO(synk): dropout (pos_encoder + encoder layers) treated as identity (eval mode).
    x = x.astype(jnp.bfloat16).reshape(B * S_pad, D)

    for lp in params["layers"]:
        x = encoder_layer(x, lp, B, S_pad, nhead)

    logits = linear(x, params["dec_w"], params["dec_b"], out_dtype=jnp.float32)
    vocab_pad = logits.shape[-1]
    logits = logits.reshape(B, S_pad, vocab_pad)[:, :S, :vocab_size]
    return logits, targets, target_pad_mask


# ----------------------------------------------------------------------------
if __name__ == "__main__":
    # Small shapes consistent with the module's forward.
    VOCAB = 32        # stand-in for len(PGN_CHARS)
    EMBED_DIM = 64
    NHEAD = 4
    DIM_FF = 128
    NLAYERS = 2
    BATCH = 2
    RAW_SEQ = 9       # inputs seq_len = 8 after [:, :-1]

    root = jax.random.PRNGKey(0)
    k_tok, k_par = jax.random.split(root)

    tokens = jax.random.randint(k_tok, (BATCH, RAW_SEQ), 0, VOCAB, dtype=jnp.int32)
    pad_mask = jnp.zeros((BATCH, RAW_SEQ), dtype=bool)  # equal-length batch -> no padding

    params = init_params(k_par, VOCAB, EMBED_DIM, NHEAD, DIM_FF, NLAYERS)

    fwd = jax.jit(lambda t, m: model_forward(t, m, params, NHEAD))
    logits, targets, target_pad_mask = fwd(tokens, pad_mask)
    jax.block_until_ready((logits, targets, target_pad_mask))

    assert logits.shape == (BATCH, RAW_SEQ - 1, VOCAB)
    assert targets.shape == (BATCH, RAW_SEQ - 1)
    assert target_pad_mask.shape == (BATCH, RAW_SEQ - 1)
    assert bool(jnp.all(jnp.isfinite(logits)))
    print("KERNEL_OK")
</pallas_src>

<mosaic_0001>
module attributes {stable_mosaic.version = 11 : i64} {
  func.func @_qkv_proj_kernel(%arg0: i32, %arg1: i32, %arg2: memref<16x64xbf16, #tpu.memory_space<vmem>>, %arg3: memref<1x64x16xbf16, #tpu.memory_space<vmem>>, %arg4: memref<1x1x16xf32, #tpu.memory_space<vmem>>, %arg5: memref<1x16x16xbf16, #tpu.memory_space<vmem>>) attributes {dimension_semantics = [#tpu.dimension_semantics<parallel>, #tpu.dimension_semantics<parallel>], iteration_bounds = array<i64: 1, 12>, scalar_prefetch = 0 : i64, scratch_operands = 0 : i64, tpu.core_type = #tpu.core_type<tc>, window_params = [{transform_indices = @transform_0, window_bounds = array<i64: 16, 64>}, {transform_indices = @transform_1, window_bounds = array<i64: 1, 64, 16>}, {transform_indices = @transform_2, window_bounds = array<i64: 1, 1, 16>}, {transform_indices = @transform_3, window_bounds = array<i64: 1, 16, 16>}]} {
    %c0 = arith.constant 0 : index
    %c0_0 = arith.constant 0 : index
    %0 = vector.load %arg2[%c0, %c0_0] : memref<16x64xbf16, #tpu.memory_space<vmem>>, vector<16x64xbf16>
    %c0_1 = arith.constant 0 : index
    %c0_2 = arith.constant 0 : index
    %c0_3 = arith.constant 0 : index
    %1 = vector.load %arg3[%c0_1, %c0_2, %c0_3] : memref<1x64x16xbf16, #tpu.memory_space<vmem>>, vector<1x64x16xbf16>
    %2 = vector.shape_cast %1 : vector<1x64x16xbf16> to vector<64x16xbf16>
    %cst = arith.constant dense<0.000000e+00> : vector<16x16xf32>
    %3 = tpu.matmul %0, %2, %cst {dimension_numbers = #tpu.dot_dimension_numbers<[1], [0], [0], [1], [0, 0, 1, 1], [], []>} : vector<16x64xbf16>, vector<64x16xbf16>, vector<16x16xf32> -> vector<16x16xf32>
    %c0_4 = arith.constant 0 : index
    %c0_5 = arith.constant 0 : index
    %c0_6 = arith.constant 0 : index
    %4 = vector.load %arg4[%c0_4, %c0_5, %c0_6] : memref<1x1x16xf32, #tpu.memory_space<vmem>>, vector<1x1x16xf32>
    %5 = vector.shape_cast %4 : vector<1x1x16xf32> to vector<1x16xf32>
    %6 = vector.broadcast %5 : vector<1x16xf32> to vector<16x16xf32>
    %7 = arith.addf %3, %6 : vector<16x16xf32>
    %8 = arith.truncf %7 : vector<16x16xf32> to vector<16x16xbf16>
    %c0_7 = arith.constant 0 : index
    %c0_8 = arith.constant 0 : index
    %c0_9 = arith.constant 0 : index
    %9 = vector.load %arg5[%c0_7, %c0_8, %c0_9] : memref<1x16x16xbf16, #tpu.memory_space<vmem>>, vector<1x16x16xbf16>
    %10 = vector.shape_cast %9 : vector<1x16x16xbf16> to vector<16x16xbf16>
    %11 = vector.shape_cast %8 : vector<16x16xbf16> to vector<1x16x16xbf16>
    tpu.vector_store %arg5[%c0_7, %c0_8, %c0_9], %11 {strides = array<i32>} : memref<1x16x16xbf16, #tpu.memory_space<vmem>>, vector<1x16x16xbf16>,
    return
  }
  func.func @transform_0(%arg0: i32, %arg1: i32) -> (i32, i32) {
    %c0_i32 = arith.constant 0 : i32
    %c0_i32_0 = arith.constant 0 : i32
    return %arg0, %c0_i32 : i32, i32
  }
  func.func @transform_1(%arg0: i32, %arg1: i32) -> (i32, i32, i32) {
    %c0_i32 = arith.constant 0 : i32
    %c0_i32_0 = arith.constant 0 : i32
    %c0_i32_1 = arith.constant 0 : i32
    return %arg1, %c0_i32, %c0_i32_0 : i32, i32, i32
  }
  func.func @transform_2(%arg0: i32, %arg1: i32) -> (i32, i32, i32) {
    %c0_i32 = arith.constant 0 : i32
    %c0_i32_0 = arith.constant 0 : i32
    %c0_i32_1 = arith.constant 0 : i32
    return %arg1, %c0_i32, %c0_i32_0 : i32, i32, i32
  }
  func.func @transform_3(%arg0: i32, %arg1: i32) -> (i32, i32, i32) {
    %c0_i32 = arith.constant 0 : i32
    %c0_i32_0 = arith.constant 0 : i32
    return %arg1, %arg0, %c0_i32 : i32, i32, i32
  }
}

module attributes {stable_mosaic.version = 11 : i64} {
  func.func @_mha_kernel(%arg0: i32, %arg1: i32, %arg2: memref<1x1x8x16xbf16, #tpu.memory_space<vmem>>, %arg3: memref<1x1x8x16xbf16, #tpu.memory_space<vmem>>, %arg4: memref<1x1x8x16xbf16, #tpu.memory_space<vmem>>, %arg5: memref<1x1x8x16xbf16, #tpu.memory_space<vmem>>) attributes {dimension_semantics = [#tpu.dimension_semantics<parallel>, #tpu.dimension_semantics<parallel>], iteration_bounds = array<i64: 2, 4>, scalar_prefetch = 0 : i64, scratch_operands = 0 : i64, tpu.core_type = #tpu.core_type<tc>, window_params = [{transform_indices = @transform_0, window_bounds = array<i64: 1, 1, 8, 16>}, {transform_indices = @transform_1, window_bounds = array<i64: 1, 1, 8, 16>}, {transform_indices = @transform_2, window_bounds = array<i64: 1, 1, 8, 16>}, {transform_indices = @transform_3, window_bounds = array<i64: 1, 1, 8, 16>}]} {
    %c0 = arith.constant 0 : index
    %c0_0 = arith.constant 0 : index
    %c0_1 = arith.constant 0 : index
    %c0_2 = arith.constant 0 : index
    %0 = vector.load %arg2[%c0, %c0_0, %c0_1, %c0_2] : memref<1x1x8x16xbf16, #tpu.memory_space<vmem>>, vector<1x1x8x16xbf16>
    %1 = vector.shape_cast %0 : vector<1x1x8x16xbf16> to vector<8x16xbf16>
    %c0_3 = arith.constant 0 : index
    %c0_4 = arith.constant 0 : index
    %c0_5 = arith.constant 0 : index
    %c0_6 = arith.constant 0 : index
    %2 = vector.load %arg3[%c0_3, %c0_4, %c0_5, %c0_6] : memref<1x1x8x16xbf16, #tpu.memory_space<vmem>>, vector<1x1x8x16xbf16>
    %3 = vector.shape_cast %2 : vector<1x1x8x16xbf16> to vector<8x16xbf16>
    %c0_7 = arith.constant 0 : index
    %c0_8 = arith.constant 0 : index
    %c0_9 = arith.constant 0 : index
    %c0_10 = arith.constant 0 : index
    %4 = vector.load %arg4[%c0_7, %c0_8, %c0_9, %c0_10] : memref<1x1x8x16xbf16, #tpu.memory_space<vmem>>, vector<1x1x8x16xbf16>
    %5 = vector.shape_cast %4 : vector<1x1x8x16xbf16> to vector<8x16xbf16>
    %cst = arith.constant dense<0.000000e+00> : vector<8x8xf32>
    %6 = tpu.matmul %1, %3, %cst {dimension_numbers = #tpu.dot_dimension_numbers<[1], [1], [0], [0], [0, 0, 1, 0], [], []>} : vector<8x16xbf16>, vector<8x16xbf16>, vector<8x8xf32> -> vector<8x8xf32>
    %cst_11 = arith.constant 2.500000e-01 : f32
    %7 = vector.broadcast %cst_11 : f32 to vector<8x8xf32>
    %8 = arith.mulf %6, %7 : vector<8x8xf32>
    %9 = tpu.iota {dimensions = array<i32: 0>} : vector<8x8xi32>
    %10 = tpu.iota {dimensions = array<i32: 1>} : vector<8x8xi32>
    %11 = arith.cmpi sgt, %10, %9 : vector<8x8xi32>
    %cst_12 = arith.constant 0xFF800000 : f32
    %12 = vector.broadcast %cst_12 : f32 to vector<8x8xf32>
    %13 = arith.select %11, %12, %8 : vector<8x8xi1>, vector<8x8xf32>
    %cst_13 = arith.constant dense<0xFF800000> : vector<8xf32>
    %14 = vector.multi_reduction <maximumf>, %13, %cst_13 [1] : vector<8x8xf32> to vector<8xf32>
    %15 = vector.shape_cast %14 : vector<8xf32> to vector<8x1xf32>
    %16 = vector.broadcast %15 : vector<8x1xf32> to vector<8x8xf32>
    %17 = arith.subf %13, %16 : vector<8x8xf32>
    %18 = math.exp %17 : vector<8x8xf32>
    %cst_14 = arith.constant dense<0.000000e+00> : vector<8xf32>
    %19 = vector.multi_reduction <add>, %18, %cst_14 [1] : vector<8x8xf32> to vector<8xf32>
    %20 = vector.shape_cast %19 : vector<8xf32> to vector<8x1xf32>
    %21 = tpu.reciprocal %20 {approx = true} : vector<8x1xf32> -> vector<8x1xf32>
    %22 = vector.broadcast %21 : vector<8x1xf32> to vector<8x8xf32>
    %23 = arith.mulf %18, %22 : vector<8x8xf32>
    %24 = arith.truncf %23 : vector<8x8xf32> to vector<8x8xbf16>
    %cst_15 = arith.constant dense<0.000000e+00> : vector<8x16xf32>
    %25 = tpu.matmul %24, %5, %cst_15 {dimension_numbers = #tpu.dot_dimension_numbers<[1], [0], [0], [1], [0, 0, 1, 1], [], []>} : vector<8x8xbf16>, vector<8x16xbf16>, vector<8x16xf32> -> vector<8x16xf32>
    %26 = arith.truncf %25 : vector<8x16xf32> to vector<8x16xbf16>
    %c0_16 = arith.constant 0 : index
    %c0_17 = arith.constant 0 : index
    %c0_18 = arith.constant 0 : index
    %c0_19 = arith.constant 0 : index
    %27 = vector.load %arg5[%c0_16, %c0_17, %c0_18, %c0_19] : memref<1x1x8x16xbf16, #tpu.memory_space<vmem>>, vector<1x1x8x16xbf16>
    %28 = vector.shape_cast %27 : vector<1x1x8x16xbf16> to vector<8x16xbf16>
    %29 = vector.shape_cast %26 : vector<8x16xbf16> to vector<1x1x8x16xbf16>
    tpu.vector_store %arg5[%c0_16, %c0_17, %c0_18, %c0_19], %29 {strides = array<i32>} : memref<1x1x8x16xbf16, #tpu.memory_space<vmem>>, vector<1x1x8x16xbf16>,
    return
  }
  func.func @transform_0(%arg0: i32, %arg1: i32) -> (i32, i32, i32, i32) {
    %c0_i32 = arith.constant 0 : i32
    %c0_i32_0 = arith.constant 0 : i32
    %c0_i32_1 = arith.constant 0 : i32
    return %arg1, %arg0, %c0_i32, %c0_i32_0 : i32, i32, i32, i32
  }
  func.func @transform_1(%arg0: i32, %arg1: i32) -> (i32, i32, i32, i32) {
    %c4_i32 = arith.constant 4 : i32
    %0 = arith.addi %c4_i32, %arg1 : i32
    %c0_i32 = arith.constant 0 : i32
    %c0_i32_0 = arith.constant 0 : i32
    %c0_i32_1 = arith.constant 0 : i32
    return %0, %arg0, %c0_i32, %c0_i32_0 : i32, i32, i32, i32
  }
  func.func @transform_2(%arg0: i32, %arg1: i32) -> (i32, i32, i32, i32) {
    %c8_i32 = arith.constant 8 : i32
    %0 = arith.addi %c8_i32, %arg1 : i32
    %c0_i32 = arith.constant 0 : i32
    %c0_i32_0 = arith.constant 0 : i32
    %c0_i32_1 = arith.constant 0 : i32
    return %0, %arg0, %c0_i32, %c0_i32_0 : i32, i32, i32, i32
  }
  func.func @transform_3(%arg0: i32, %arg1: i32) -> (i32, i32, i32, i32) {
    %c0_i32 = arith.constant 0 : i32
    %c0_i32_0 = arith.constant 0 : i32
    %c0_i32_1 = arith.constant 0 : i32
    return %arg1, %arg0, %c0_i32, %c0_i32_0 : i32, i32, i32, i32
  }
}

module attributes {stable_mosaic.version = 11 : i64} {
  func.func @_outproj_res_ln_kernel(%arg0: i32, %arg1: i32, %arg2: memref<1x16x16xbf16, #tpu.memory_space<vmem>>, %arg3: memref<1x16x64xbf16, #tpu.memory_space<vmem>>, %arg4: memref<1x64xf32, #tpu.memory_space<vmem>>, %arg5: memref<16x64xbf16, #tpu.memory_space<vmem>>, %arg6: memref<1x64xf32, #tpu.memory_space<vmem>>, %arg7: memref<1x64xf32, #tpu.memory_space<vmem>>, %arg8: memref<16x64xbf16, #tpu.memory_space<vmem>>, %arg9: memref<16x64xf32, #tpu.memory_space<vmem>>) attributes {dimension_semantics = [#tpu.dimension_semantics<parallel>, #tpu.dimension_semantics<arbitrary>], iteration_bounds = array<i64: 1, 4>, scalar_prefetch = 0 : i64, scratch_operands = 1 : i64, tpu.core_type = #tpu.core_type<tc>, window_params = [{transform_indices = @transform_0, window_bounds = array<i64: 1, 16, 16>}, {transform_indices = @transform_1, window_bounds = array<i64: 1, 16, 64>}, {pipeline_mode = #tpu.pipeline_mode<synchronous>, transform_indices = @transform_2, window_bounds = array<i64: 1, 64>}, {transform_indices = @transform_3, window_bounds = array<i64: 16, 64>}, {pipeline_mode = #tpu.pipeline_mode<synchronous>, transform_indices = @transform_4, window_bounds = array<i64: 1, 64>}, {pipeline_mode = #tpu.pipeline_mode<synchronous>, transform_indices = @transform_5, window_bounds = array<i64: 1, 64>}, {transform_indices = @transform_6, window_bounds = array<i64: 16, 64>}]} {
    %c0_i32 = arith.constant 0 : i32
    %0 = arith.cmpi eq, %arg1, %c0_i32 : i32
    %1 = arith.extui %0 : i1 to i32
    %c0_i32_0 = arith.constant 0 : i32
    %2 = arith.cmpi ne, %1, %c0_i32_0 : i32
    scf.if %2 {
      %cst_11 = arith.constant 0.000000e+00 : f32
      %14 = vector.broadcast %cst_11 : f32 to vector<16x64xf32>
      %c0_12 = arith.constant 0 : index
      %c0_13 = arith.constant 0 : index
      %15 = vector.load %arg9[%c0_12, %c0_13] : memref<16x64xf32, #tpu.memory_space<vmem>>, vector<16x64xf32>
      tpu.vector_store %arg9[%c0_12, %c0_13], %14 {strides = array<i32>} : memref<16x64xf32, #tpu.memory_space<vmem>>, vector<16x64xf32>,
    } else {
    }
    %c0 = arith.constant 0 : index
    %c0_1 = arith.constant 0 : index
    %3 = vector.load %arg9[%c0, %c0_1] : memref<16x64xf32, #tpu.memory_space<vmem>>, vector<16x64xf32>
    %c0_2 = arith.constant 0 : index
    %c0_3 = arith.constant 0 : index
    %c0_4 = arith.constant 0 : index
    %4 = vector.load %arg2[%c0_2, %c0_3, %c0_4] : memref<1x16x16xbf16, #tpu.memory_space<vmem>>, vector<1x16x16xbf16>
    %5 = vector.shape_cast %4 : vector<1x16x16xbf16> to vector<16x16xbf16>
    %c0_5 = arith.constant 0 : index
    %c0_6 = arith.constant 0 : index
    %c0_7 = arith.constant 0 : index
    %6 = vector.load %arg3[%c0_5, %c0_6, %c0_7] : memref<1x16x64xbf16, #tpu.memory_space<vmem>>, vector<1x16x64xbf16>
    %7 = vector.shape_cast %6 : vector<1x16x64xbf16> to vector<16x64xbf16>
    %cst = arith.constant dense<0.000000e+00> : vector<16x64xf32>
    %8 = tpu.matmul %5, %7, %cst {dimension_numbers = #tpu.dot_dimension_numbers<[1], [0], [0], [1], [0, 0, 1, 1], [], []>} : vector<16x16xbf16>, vector<16x64xbf16>, vector<16x64xf32> -> vector<16x64xf32>
    %9 = arith.addf %3, %8 : vector<16x64xf32>
    %c0_8 = arith.constant 0 : index
    %c0_9 = arith.constant 0 : index
    %10 = vector.load %arg9[%c0_8, %c0_9] : memref<16x64xf32, #tpu.memory_space<vmem>>, vector<16x64xf32>
    tpu.vector_store %arg9[%c0_8, %c0_9], %9 {strides = array<i32>} : memref<16x64xf32, #tpu.memory_space<vmem>>, vector<16x64xf32>,
    %c3_i32 = arith.constant 3 : i32
    %11 = arith.cmpi eq, %arg1, %c3_i32 : i32
    %12 = arith.extui %11 : i1 to i32
    %c0_i32_10 = arith.constant 0 : i32
    %13 = arith.cmpi ne, %12, %c0_i32_10 : i32
    scf.if %13 {
      %c0_11 = arith.constant 0 : index
      %c0_12 = arith.constant 0 : index
      %14 = vector.load %arg9[%c0_11, %c0_12] : memref<16x64xf32, #tpu.memory_space<vmem>>, vector<16x64xf32>
      %c0_13 = arith.constant 0 : index
      %c0_14 = arith.constant 0 : index
      %15 = vector.load %arg4[%c0_13, %c0_14] : memref<1x64xf32, #tpu.memory_space<vmem>>, vector<1x64xf32>
      %16 = vector.broadcast %15 : vector<1x64xf32> to vector<16x64xf32>
      %17 = arith.addf %14, %16 : vector<16x64xf32>
      %c0_15 = arith.constant 0 : index
      %c0_16 = arith.constant 0 : index
      %18 = vector.load %arg5[%c0_15, %c0_16] : memref<16x64xbf16, #tpu.memory_space<vmem>>, vector<16x64xbf16>
      %19 = arith.extf %18 : vector<16x64xbf16> to vector<16x64xf32>
      %20 = arith.addf %17, %19 : vector<16x64xf32>
      %cst_17 = arith.constant dense<0.000000e+00> : vector<16xf32>
      %21 = vector.multi_reduction <add>, %20, %cst_17 [1] : vector<16x64xf32> to vector<16xf32>
      %22 = vector.shape_cast %21 : vector<16xf32> to vector<16x1xf32>
      %cst_18 = arith.constant 6.400000e+01 : f32
      %23 = vector.broadcast %cst_18 : f32 to vector<16x1xf32>
      %24 = arith.divf %22, %23 : vector<16x1xf32>
      %25 = vector.broadcast %24 : vector<16x1xf32> to vector<16x64xf32>
      %26 = arith.subf %20, %25 : vector<16x64xf32>
      %27 = arith.mulf %26, %26 : vector<16x64xf32>
      %cst_19 = arith.constant dense<0.000000e+00> : vector<16xf32>
      %28 = vector.multi_reduction <add>, %27, %cst_19 [1] : vector<16x64xf32> to vector<16xf32>
      %29 = vector.shape_cast %28 : vector<16xf32> to vector<16x1xf32>
      %cst_20 = arith.constant 6.400000e+01 : f32
      %30 = vector.broadcast %cst_20 : f32 to vector<16x1xf32>
      %31 = arith.divf %29, %30 : vector<16x1xf32>
      %32 = vector.broadcast %24 : vector<16x1xf32> to vector<16x64xf32>
      %33 = arith.subf %20, %32 : vector<16x64xf32>
      %cst_21 = arith.constant 9.99999974E-6 : f32
      %34 = vector.broadcast %cst_21 : f32 to vector<16x1xf32>
      %35 = arith.addf %31, %34 : vector<16x1xf32>
      %36 = math.rsqrt %35 : vector<16x1xf32>
      %37 = vector.broadcast %36 : vector<16x1xf32> to vector<16x64xf32>
      %38 = arith.mulf %33, %37 : vector<16x64xf32>
      %c0_22 = arith.constant 0 : index
      %c0_23 = arith.constant 0 : index
      %39 = vector.load %arg6[%c0_22, %c0_23] : memref<1x64xf32, #tpu.memory_space<vmem>>, vector<1x64xf32>
      %40 = vector.broadcast %39 : vector<1x64xf32> to vector<16x64xf32>
      %41 = arith.mulf %38, %40 : vector<16x64xf32>
      %c0_24 = arith.constant 0 : index
      %c0_25 = arith.constant 0 : index
      %42 = vector.load %arg7[%c0_24, %c0_25] : memref<1x64xf32, #tpu.memory_space<vmem>>, vector<1x64xf32>
      %43 = vector.broadcast %42 : vector<1x64xf32> to vector<16x64xf32>
      %44 = arith.addf %41, %43 : vector<16x64xf32>
      %45 = arith.truncf %44 : vector<16x64xf32> to vector<16x64xbf16>
      %c0_26 = arith.constant 0 : index
      %c0_27 = arith.constant 0 : index
      %46 = vector.load %arg8[%c0_26, %c0_27] : memref<16x64xbf16, #tpu.memory_space<vmem>>, vector<16x64xbf16>
      tpu.vector_store %arg8[%c0_26, %c0_27], %45 {strides = array<i32>} : memref<16x64xbf16, #tpu.memory_space<vmem>>, vector<16x64xbf16>,
    } else {
    }
    return
  }
  func.func @transform_0(%arg0: i32, %arg1: i32) -> (i32, i32, i32) {
    %c0_i32 = arith.constant 0 : i32
    %c0_i32_0 = arith.constant 0 : i32
    return %arg1, %arg0, %c0_i32 : i32, i32, i32
  }
  func.func @transform_1(%arg0: i32, %arg1: i32) -> (i32, i32, i32) {
    %c0_i32 = arith.constant 0 : i32
    %c0_i32_0 = arith.constant 0 : i32
    %c0_i32_1 = arith.constant 0 : i32
    return %arg1, %c0_i32, %c0_i32_0 : i32, i32, i32
  }
  func.func @transform_2(%arg0: i32, %arg1: i32) -> (i32, i32) {
    %c0_i32 = arith.constant 0 : i32
    %c0_i32_0 = arith.constant 0 : i32
    %c0_i32_1 = arith.constant 0 : i32
    return %c0_i32, %c0_i32_0 : i32, i32
  }
  func.func @transform_3(%arg0: i32, %arg1: i32) -> (i32, i32) {
    %c0_i32 = arith.constant 0 : i32
    %c0_i32_0 = arith.constant 0 : i32
    return %arg0, %c0_i32 : i32, i32
  }
  func.func @transform_4(%arg0: i32, %arg1: i32) -> (i32, i32) {
    %c0_i32 = arith.constant 0 : i32
    %c0_i32_0 = arith.constant 0 : i32
    %c0_i32_1 = arith.constant 0 : i32
    return %c0_i32, %c0_i32_0 : i32, i32
  }
  func.func @transform_5(%arg0: i32, %arg1: i32) -> (i32, i32) {
    %c0_i32 = arith.constant 0 : i32
    %c0_i32_0 = arith.constant 0 : i32
    %c0_i32_1 = arith.constant 0 : i32
    return %c0_i32, %c0_i32_0 : i32, i32
  }
  func.func @transform_6(%arg0: i32, %arg1: i32) -> (i32, i32) {
    %c0_i32 = arith.constant 0 : i32
    %c0_i32_0 = arith.constant 0 : i32
    return %arg0, %c0_i32 : i32, i32
  }
}

module attributes {stable_mosaic.version = 11 : i64} {
  func.func @_ffn_res_ln_kernel(%arg0: i32, %arg1: i32, %arg2: memref<16x64xbf16, #tpu.memory_space<vmem>>, %arg3: memref<64x128xbf16, #tpu.memory_space<vmem>>, %arg4: memref<1x128xf32, #tpu.memory_space<vmem>>, %arg5: memref<128x64xbf16, #tpu.memory_space<vmem>>, %arg6: memref<1x64xf32, #tpu.memory_space<vmem>>, %arg7: memref<1x64xf32, #tpu.memory_space<vmem>>, %arg8: memref<1x64xf32, #tpu.memory_space<vmem>>, %arg9: memref<16x64xbf16, #tpu.memory_space<vmem>>, %arg10: memref<16x64xf32, #tpu.memory_space<vmem>>) attributes {dimension_semantics = [#tpu.dimension_semantics<parallel>, #tpu.dimension_semantics<arbitrary>], iteration_bounds = array<i64: 1, 1>, scalar_prefetch = 0 : i64, scratch_operands = 1 : i64, tpu.core_type = #tpu.core_type<tc>, window_params = [{transform_indices = @transform_0, window_bounds = array<i64: 16, 64>}, {transform_indices = @transform_1, window_bounds = array<i64: 64, 128>}, {transform_indices = @transform_2, window_bounds = array<i64: 1, 128>}, {transform_indices = @transform_3, window_bounds = array<i64: 128, 64>}, {pipeline_mode = #tpu.pipeline_mode<synchronous>, transform_indices = @transform_4, window_bounds = array<i64: 1, 64>}, {pipeline_mode = #tpu.pipeline_mode<synchronous>, transform_indices = @transform_5, window_bounds = array<i64: 1, 64>}, {pipeline_mode = #tpu.pipeline_mode<synchronous>, transform_indices = @transform_6, window_bounds = array<i64: 1, 64>}, {transform_indices = @transform_7, window_bounds = array<i64: 16, 64>}]} {
    %c0_i32 = arith.constant 0 : i32
    %0 = arith.cmpi eq, %arg1, %c0_i32 : i32
    %1 = arith.extui %0 : i1 to i32
    %c0_i32_0 = arith.constant 0 : i32
    %2 = arith.cmpi ne, %1, %c0_i32_0 : i32
    scf.if %2 {
      %cst_16 = arith.constant 0.000000e+00 : f32
      %20 = vector.broadcast %cst_16 : f32 to vector<16x64xf32>
      %c0_17 = arith.constant 0 : index
      %c0_18 = arith.constant 0 : index
      %21 = vector.load %arg10[%c0_17, %c0_18] : memref<16x64xf32, #tpu.memory_space<vmem>>, vector<16x64xf32>
      tpu.vector_store %arg10[%c0_17, %c0_18], %20 {strides = array<i32>} : memref<16x64xf32, #tpu.memory_space<vmem>>, vector<16x64xf32>,
    } else {
    }
    %c0 = arith.constant 0 : index
    %c0_1 = arith.constant 0 : index
    %3 = vector.load %arg2[%c0, %c0_1] : memref<16x64xbf16, #tpu.memory_space<vmem>>, vector<16x64xbf16>
    %c0_2 = arith.constant 0 : index
    %c0_3 = arith.constant 0 : index
    %4 = vector.load %arg3[%c0_2, %c0_3] : memref<64x128xbf16, #tpu.memory_space<vmem>>, vector<64x128xbf16>
    %cst = arith.constant dense<0.000000e+00> : vector<16x128xf32>
    %5 = tpu.matmul %3, %4, %cst {dimension_numbers = #tpu.dot_dimension_numbers<[1], [0], [0], [1], [0, 0, 1, 1], [], []>} : vector<16x64xbf16>, vector<64x128xbf16>, vector<16x128xf32> -> vector<16x128xf32>
    %c0_4 = arith.constant 0 : index
    %c0_5 = arith.constant 0 : index
    %6 = vector.load %arg4[%c0_4, %c0_5] : memref<1x128xf32, #tpu.memory_space<vmem>>, vector<1x128xf32>
    %7 = vector.broadcast %6 : vector<1x128xf32> to vector<16x128xf32>
    %8 = arith.addf %5, %7 : vector<16x128xf32>
    %cst_6 = arith.constant 0.000000e+00 : f32
    %9 = vector.broadcast %cst_6 : f32 to vector<16x128xf32>
    %10 = arith.maximumf %8, %9 : vector<16x128xf32>
    %c0_7 = arith.constant 0 : index
    %c0_8 = arith.constant 0 : index
    %11 = vector.load %arg10[%c0_7, %c0_8] : memref<16x64xf32, #tpu.memory_space<vmem>>, vector<16x64xf32>
    %12 = arith.truncf %10 : vector<16x128xf32> to vector<16x128xbf16>
    %c0_9 = arith.constant 0 : index
    %c0_10 = arith.constant 0 : index
    %13 = vector.load %arg5[%c0_9, %c0_10] : memref<128x64xbf16, #tpu.memory_space<vmem>>, vector<128x64xbf16>
    %cst_11 = arith.constant dense<0.000000e+00> : vector<16x64xf32>
    %14 = tpu.matmul %12, %13, %cst_11 {dimension_numbers = #tpu.dot_dimension_numbers<[1], [0], [0], [1], [0, 0, 1, 1], [], []>} : vector<16x128xbf16>, vector<128x64xbf16>, vector<16x64xf32> -> vector<16x64xf32>
    %15 = arith.addf %11, %14 : vector<16x64xf32>
    %c0_12 = arith.constant 0 : index
    %c0_13 = arith.constant 0 : index
    %16 = vector.load %arg10[%c0_12, %c0_13] : memref<16x64xf32, #tpu.memory_space<vmem>>, vector<16x64xf32>
    tpu.vector_store %arg10[%c0_12, %c0_13], %15 {strides = array<i32>} : memref<16x64xf32, #tpu.memory_space<vmem>>, vector<16x64xf32>,
    %c0_i32_14 = arith.constant 0 : i32
    %17 = arith.cmpi eq, %arg1, %c0_i32_14 : i32
    %18 = arith.extui %17 : i1 to i32
    %c0_i32_15 = arith.constant 0 : i32
    %19 = arith.cmpi ne, %18, %c0_i32_15 : i32
    scf.if %19 {
      %c0_16 = arith.constant 0 : index
      %c0_17 = arith.constant 0 : index
      %20 = vector.load %arg10[%c0_16, %c0_17] : memref<16x64xf32, #tpu.memory_space<vmem>>, vector<16x64xf32>
      %c0_18 = arith.constant 0 : index
      %c0_19 = arith.constant 0 : index
      %21 = vector.load %arg6[%c0_18, %c0_19] : memref<1x64xf32, #tpu.memory_space<vmem>>, vector<1x64xf32>
      %22 = vector.broadcast %21 : vector<1x64xf32> to vector<16x64xf32>
      %23 = arith.addf %20, %22 : vector<16x64xf32>
      %c0_20 = arith.constant 0 : index
      %c0_21 = arith.constant 0 : index
      %24 = vector.load %arg2[%c0_20, %c0_21] : memref<16x64xbf16, #tpu.memory_space<vmem>>, vector<16x64xbf16>
      %25 = arith.extf %24 : vector<16x64xbf16> to vector<16x64xf32>
      %26 = arith.addf %23, %25 : vector<16x64xf32>
      %cst_22 = arith.constant dense<0.000000e+00> : vector<16xf32>
      %27 = vector.multi_reduction <add>, %26, %cst_22 [1] : vector<16x64xf32> to vector<16xf32>
      %28 = vector.shape_cast %27 : vector<16xf32> to vector<16x1xf32>
      %cst_23 = arith.constant 6.400000e+01 : f32
      %29 = vector.broadcast %cst_23 : f32 to vector<16x1xf32>
      %30 = arith.divf %28, %29 : vector<16x1xf32>
      %31 = vector.broadcast %30 : vector<16x1xf32> to vector<16x64xf32>
      %32 = arith.subf %26, %31 : vector<16x64xf32>
      %33 = arith.mulf %32, %32 : vector<16x64xf32>
      %cst_24 = arith.constant dense<0.000000e+00> : vector<16xf32>
      %34 = vector.multi_reduction <add>, %33, %cst_24 [1] : vector<16x64xf32> to vector<16xf32>
      %35 = vector.shape_cast %34 : vector<16xf32> to vector<16x1xf32>
      %cst_25 = arith.constant 6.400000e+01 : f32
      %36 = vector.broadcast %cst_25 : f32 to vector<16x1xf32>
      %37 = arith.divf %35, %36 : vector<16x1xf32>
      %38 = vector.broadcast %30 : vector<16x1xf32> to vector<16x64xf32>
      %39 = arith.subf %26, %38 : vector<16x64xf32>
      %cst_26 = arith.constant 9.99999974E-6 : f32
      %40 = vector.broadcast %cst_26 : f32 to vector<16x1xf32>
      %41 = arith.addf %37, %40 : vector<16x1xf32>
      %42 = math.rsqrt %41 : vector<16x1xf32>
      %43 = vector.broadcast %42 : vector<16x1xf32> to vector<16x64xf32>
      %44 = arith.mulf %39, %43 : vector<16x64xf32>
      %c0_27 = arith.constant 0 : index
      %c0_28 = arith.constant 0 : index
      %45 = vector.load %arg7[%c0_27, %c0_28] : memref<1x64xf32, #tpu.memory_space<vmem>>, vector<1x64xf32>
      %46 = vector.broadcast %45 : vector<1x64xf32> to vector<16x64xf32>
      %47 = arith.mulf %44, %46 : vector<16x64xf32>
      %c0_29 = arith.constant 0 : index
      %c0_30 = arith.constant 0 : index
      %48 = vector.load %arg8[%c0_29, %c0_30] : memref<1x64xf32, #tpu.memory_space<vmem>>, vector<1x64xf32>
      %49 = vector.broadcast %48 : vector<1x64xf32> to vector<16x64xf32>
      %50 = arith.addf %47, %49 : vector<16x64xf32>
      %51 = arith.truncf %50 : vector<16x64xf32> to vector<16x64xbf16>
      %c0_31 = arith.constant 0 : index
      %c0_32 = arith.constant 0 : index
      %52 = vector.load %arg9[%c0_31, %c0_32] : memref<16x64xbf16, #tpu.memory_space<vmem>>, vector<16x64xbf16>
      tpu.vector_store %arg9[%c0_31, %c0_32], %51 {strides = array<i32>} : memref<16x64xbf16, #tpu.memory_space<vmem>>, vector<16x64xbf16>,
    } else {
    }
    return
  }
  func.func @transform_0(%arg0: i32, %arg1: i32) -> (i32, i32) {
    %c0_i32 = arith.constant 0 : i32
    %c0_i32_0 = arith.constant 0 : i32
    return %arg0, %c0_i32 : i32, i32
  }
  func.func @transform_1(%arg0: i32, %arg1: i32) -> (i32, i32) {
    %c0_i32 = arith.constant 0 : i32
    %c0_i32_0 = arith.constant 0 : i32
    return %c0_i32, %arg1 : i32, i32
  }
  func.func @transform_2(%arg0: i32, %arg1: i32) -> (i32, i32) {
    %c0_i32 = arith.constant 0 : i32
    %c0_i32_0 = arith.constant 0 : i32
    return %c0_i32, %arg1 : i32, i32
  }
  func.func @transform_3(%arg0: i32, %arg1: i32) -> (i32, i32) {
    %c0_i32 = arith.constant 0 : i32
    %c0_i32_0 = arith.constant 0 : i32
    return %arg1, %c0_i32 : i32, i32
  }
  func.func @transform_4(%arg0: i32, %arg1: i32) -> (i32, i32) {
    %c0_i32 = arith.constant 0 : i32
    %c0_i32_0 = arith.constant 0 : i32
    %c0_i32_1 = arith.constant 0 : i32
    return %c0_i32, %c0_i32_0 : i32, i32
  }
  func.func @transform_5(%arg0: i32, %arg1: i32) -> (i32, i32) {
    %c0_i32 = arith.constant 0 : i32
    %c0_i32_0 = arith.constant 0 : i32
    %c0_i32_1 = arith.constant 0 : i32
    return %c0_i32, %c0_i32_0 : i32, i32
  }
  func.func @transform_6(%arg0: i32, %arg1: i32) -> (i32, i32) {
    %c0_i32 = arith.constant 0 : i32
    %c0_i32_0 = arith.constant 0 : i32
    %c0_i32_1 = arith.constant 0 : i32
    return %c0_i32, %c0_i32_0 : i32, i32
  }
  func.func @transform_7(%arg0: i32, %arg1: i32) -> (i32, i32) {
    %c0_i32 = arith.constant 0 : i32
    %c0_i32_0 = arith.constant 0 : i32
    return %arg0, %c0_i32 : i32, i32
  }
}

module attributes {stable_mosaic.version = 11 : i64} {
  func.func @_qkv_proj_kernel(%arg0: i32, %arg1: i32, %arg2: memref<16x64xbf16, #tpu.memory_space<vmem>>, %arg3: memref<1x64x16xbf16, #tpu.memory_space<vmem>>, %arg4: memref<1x1x16xf32, #tpu.memory_space<vmem>>, %arg5: memref<1x16x16xbf16, #tpu.memory_space<vmem>>) attributes {dimension_semantics = [#tpu.dimension_semantics<parallel>, #tpu.dimension_semantics<parallel>], iteration_bounds = array<i64: 1, 12>, scalar_prefetch = 0 : i64, scratch_operands = 0 : i64, tpu.core_type = #tpu.core_type<tc>, window_params = [{transform_indices = @transform_0, window_bounds = array<i64: 16, 64>}, {transform_indices = @transform_1, window_bounds = array<i64: 1, 64, 16>}, {transform_indices = @transform_2, window_bounds = array<i64: 1, 1, 16>}, {transform_indices = @transform_3, window_bounds = array<i64: 1, 16, 16>}]} {
    %c0 = arith.constant 0 : index
    %c0_0 = arith.constant 0 : index
    %0 = vector.load %arg2[%c0, %c0_0] : memref<16x64xbf16, #tpu.memory_space<vmem>>, vector<16x64xbf16>
    %c0_1 = arith.constant 0 : index
    %c0_2 = arith.constant 0 : index
    %c0_3 = arith.constant 0 : index
    %1 = vector.load %arg3[%c0_1, %c0_2, %c0_3] : memref<1x64x16xbf16, #tpu.memory_space<vmem>>, vector<1x64x16xbf16>
    %2 = vector.shape_cast %1 : vector<1x64x16xbf16> to vector<64x16xbf16>
    %cst = arith.constant dense<0.000000e+00> : vector<16x16xf32>
    %3 = tpu.matmul %0, %2, %cst {dimension_numbers = #tpu.dot_dimension_numbers<[1], [0], [0], [1], [0, 0, 1, 1], [], []>} : vector<16x64xbf16>, vector<64x16xbf16>, vector<16x16xf32> -> vector<16x16xf32>
    %c0_4 = arith.constant 0 : index
    %c0_5 = arith.constant 0 : index
    %c0_6 = arith.constant 0 : index
    %4 = vector.load %arg4[%c0_4, %c0_5, %c0_6] : memref<1x1x16xf32, #tpu.memory_space<vmem>>, vector<1x1x16xf32>
    %5 = vector.shape_cast %4 : vector<1x1x16xf32> to vector<1x16xf32>
    %6 = vector.broadcast %5 : vector<1x16xf32> to vector<16x16xf32>
    %7 = arith.addf %3, %6 : vector<16x16xf32>
    %8 = arith.truncf %7 : vector<16x16xf32> to vector<16x16xbf16>
    %c0_7 = arith.constant 0 : index
    %c0_8 = arith.constant 0 : index
    %c0_9 = arith.constant 0 : index
    %9 = vector.load %arg5[%c0_7, %c0_8, %c0_9] : memref<1x16x16xbf16, #tpu.memory_space<vmem>>, vector<1x16x16xbf16>
    %10 = vector.shape_cast %9 : vector<1x16x16xbf16> to vector<16x16xbf16>
    %11 = vector.shape_cast %8 : vector<16x16xbf16> to vector<1x16x16xbf16>
    tpu.vector_store %arg5[%c0_7, %c0_8, %c0_9], %11 {strides = array<i32>} : memref<1x16x16xbf16, #tpu.memory_space<vmem>>, vector<1x16x16xbf16>,
    return
  }
  func.func @transform_0(%arg0: i32, %arg1: i32) -> (i32, i32) {
    %c0_i32 = arith.constant 0 : i32
    %c0_i32_0 = arith.constant 0 : i32
    return %arg0, %c0_i32 : i32, i32
  }
  func.func @transform_1(%arg0: i32, %arg1: i32) -> (i32, i32, i32) {
    %c0_i32 = arith.constant 0 : i32
    %c0_i32_0 = arith.constant 0 : i32
    %c0_i32_1 = arith.constant 0 : i32
    return %arg1, %c0_i32, %c0_i32_0 : i32, i32, i32
  }
  func.func @transform_2(%arg0: i32, %arg1: i32) -> (i32, i32, i32) {
    %c0_i32 = arith.constant 0 : i32
    %c0_i32_0 = arith.constant 0 : i32
    %c0_i32_1 = arith.constant 0 : i32
    return %arg1, %c0_i32, %c0_i32_0 : i32, i32, i32
  }
  func.func @transform_3(%arg0: i32, %arg1: i32) -> (i32, i32, i32) {
    %c0_i32 = arith.constant 0 : i32
    %c0_i32_0 = arith.constant 0 : i32
    return %arg1, %arg0, %c0_i32 : i32, i32, i32
  }
}

module attributes {stable_mosaic.version = 11 : i64} {
  func.func @_matmul_kernel(%arg0: i32, %arg1: i32, %arg2: i32, %arg3: memref<16x64xbf16, #tpu.memory_space<vmem>>, %arg4: memref<64x128xbf16, #tpu.memory_space<vmem>>, %arg5: memref<1x128xf32, #tpu.memory_space<vmem>>, %arg6: memref<16x128xf32, #tpu.memory_space<vmem>>, %arg7: memref<16x128xf32, #tpu.memory_space<vmem>>) attributes {dimension_semantics = [#tpu.dimension_semantics<parallel>, #tpu.dimension_semantics<parallel>, #tpu.dimension_semantics<arbitrary>], iteration_bounds = array<i64: 1, 1, 1>, scalar_prefetch = 0 : i64, scratch_operands = 1 : i64, tpu.core_type = #tpu.core_type<tc>, window_params = [{transform_indices = @transform_0, window_bounds = array<i64: 16, 64>}, {transform_indices = @transform_1, window_bounds = array<i64: 64, 128>}, {transform_indices = @transform_2, window_bounds = array<i64: 1, 128>}, {transform_indices = @transform_3, window_bounds = array<i64: 16, 128>}]} {
    %c0_i32 = arith.constant 0 : i32
    %0 = arith.cmpi eq, %arg2, %c0_i32 : i32
    %1 = arith.extui %0 : i1 to i32
    %c0_i32_0 = arith.constant 0 : i32
    %2 = arith.cmpi ne, %1, %c0_i32_0 : i32
    scf.if %2 {
      %cst_10 = arith.constant 0.000000e+00 : f32
      %12 = vector.broadcast %cst_10 : f32 to vector<16x128xf32>
      %c0_11 = arith.constant 0 : index
      %c0_12 = arith.constant 0 : index
      %13 = vector.load %arg7[%c0_11, %c0_12] : memref<16x128xf32, #tpu.memory_space<vmem>>, vector<16x128xf32>
      tpu.vector_store %arg7[%c0_11, %c0_12], %12 {strides = array<i32>} : memref<16x128xf32, #tpu.memory_space<vmem>>, vector<16x128xf32>,
    } else {
    }
    %c0 = arith.constant 0 : index
    %c0_1 = arith.constant 0 : index
    %3 = vector.load %arg7[%c0, %c0_1] : memref<16x128xf32, #tpu.memory_space<vmem>>, vector<16x128xf32>
    %c0_2 = arith.constant 0 : index
    %c0_3 = arith.constant 0 : index
    %4 = vector.load %arg3[%c0_2, %c0_3] : memref<16x64xbf16, #tpu.memory_space<vmem>>, vector<16x64xbf16>
    %c0_4 = arith.constant 0 : index
    %c0_5 = arith.constant 0 : index
    %5 = vector.load %arg4[%c0_4, %c0_5] : memref<64x128xbf16, #tpu.memory_space<vmem>>, vector<64x128xbf16>
    %cst = arith.constant dense<0.000000e+00> : vector<16x128xf32>
    %6 = tpu.matmul %4, %5, %cst {dimension_numbers = #tpu.dot_dimension_numbers<[1], [0], [0], [1], [0, 0, 1, 1], [], []>} : vector<16x64xbf16>, vector<64x128xbf16>, vector<16x128xf32> -> vector<16x128xf32>
    %7 = arith.addf %3, %6 : vector<16x128xf32>
    %c0_6 = arith.constant 0 : index
    %c0_7 = arith.constant 0 : index
    %8 = vector.load %arg7[%c0_6, %c0_7] : memref<16x128xf32, #tpu.memory_space<vmem>>, vector<16x128xf32>
    tpu.vector_store %arg7[%c0_6, %c0_7], %7 {strides = array<i32>} : memref<16x128xf32, #tpu.memory_space<vmem>>, vector<16x128xf32>,
    %c0_i32_8 = arith.constant 0 : i32
    %9 = arith.cmpi eq, %arg2, %c0_i32_8 : i32
    %10 = arith.extui %9 : i1 to i32
    %c0_i32_9 = arith.constant 0 : i32
    %11 = arith.cmpi ne, %10, %c0_i32_9 : i32
    scf.if %11 {
      %c0_10 = arith.constant 0 : index
      %c0_11 = arith.constant 0 : index
      %12 = vector.load %arg7[%c0_10, %c0_11] : memref<16x128xf32, #tpu.memory_space<vmem>>, vector<16x128xf32>
      %c0_12 = arith.constant 0 : index
      %c0_13 = arith.constant 0 : index
      %13 = vector.load %arg5[%c0_12, %c0_13] : memref<1x128xf32, #tpu.memory_space<vmem>>, vector<1x128xf32>
      %14 = vector.broadcast %13 : vector<1x128xf32> to vector<16x128xf32>
      %15 = arith.addf %12, %14 : vector<16x128xf32>
      %c0_14 = arith.constant 0 : index
      %c0_15 = arith.constant 0 : index
      %16 = vector.load %arg6[%c0_14, %c0_15] : memref<16x128xf32, #tpu.memory_space<vmem>>, vector<16x128xf32>
      tpu.vector_store %arg6[%c0_14, %c0_15], %15 {strides = array<i32>} : memref<16x128xf32, #tpu.memory_space<vmem>>, vector<16x128xf32>,
    } else {
    }
    return
  }
  func.func @transform_0(%arg0: i32, %arg1: i32, %arg2: i32) -> (i32, i32) {
    %c0_i32 = arith.constant 0 : i32
    return %arg0, %arg2 : i32, i32
  }
  func.func @transform_1(%arg0: i32, %arg1: i32, %arg2: i32) -> (i32, i32) {
    %c0_i32 = arith.constant 0 : i32
    return %arg2, %arg1 : i32, i32
  }
  func.func @transform_2(%arg0: i32, %arg1: i32, %arg2: i32) -> (i32, i32) {
    %c0_i32 = arith.constant 0 : i32
    %c0_i32_0 = arith.constant 0 : i32
    return %c0_i32, %arg1 : i32, i32
  }
  func.func @transform_3(%arg0: i32, %arg1: i32, %arg2: i32) -> (i32, i32) {
    %c0_i32 = arith.constant 0 : i32
    return %arg0, %arg1 : i32, i32
  }
}

</mosaic_0001>

<llo_original>
// kernel: _lambda_.11
$region0: #{_lambda_.11}
  #allocation0 [shape = 'u32[]', space=smem, size = 0x4, offset = 0x4, fixed_abs, tag = 'smem constant byte address 0x4 - core index']
  #allocation1 [shape = 'u32[144,128]{1,0:T(1,128)}', space=vmem, size = 0x12000, scoped, tag = 'internal scratch']
  #allocation2 [shape = 'f32[16,64]{1,0:T(8,128)}', space=vmem, size = 0x2000, scoped, tag = 'scratch operand']
  %s0 = inlined_call_operand.vmem [shape: bf16[4,16,16], index: 0, kind: input, shape index: {}]
  %s1 = inlined_call_operand.vmem [shape: bf16[4,16,64], index: 1, kind: input, shape index: {}]
  %s2 = inlined_call_operand.vmem [shape: f32[1,64], index: 2, kind: input, shape index: {}, may-alias: {2,5}]
  %s3 = inlined_call_operand.vmem [shape: bf16[16,64], index: 3, kind: input, shape index: {}]
  %s4 = inlined_call_operand.vmem [shape: f32[1,64], index: 4, kind: input, shape index: {}]
  %s5 = inlined_call_operand.vmem [shape: f32[1,64], index: 5, kind: input, shape index: {}, may-alias: {2,5}]
  %s6 = inlined_call_operand.vmem [shape: bf16[16,64], index: 6, kind: output, shape index: {}]
  %s7 = sld [smem:[#allocation0]]
  $region65: #{_lambda_.11} parent=0
    _
  %s9 = ssub.s32 1, %s7
  %s10 = scalar_select 0, %s9, %s7
  loop: start=0, step=1, limit=6
  $region2: #{_lambda_.11} parent=0 // loop_pre_header
    _
  $region3: #{_lambda_.11} parent=0 // loop_header
    %s12 = sphi 0, %s16
    %p13 = scmp.ge.s32.totalorder %s12, 6
    %s19 = sphi 0, %s31
    %s20 = sphi 0, %s27
    %s21 = sphi 0, %s19
    %s22 = sphi 0, %s20
    %s23 = sphi 0, %s21
    %s24 = sphi 0, %s22
    %s36 = sphi 0, %s38
    %s39 = sphi 0, %s36
    %s40 = sphi 0, %s39
    %s56 = sphi 0, %s40
    %s62 = sphi 0, %s64
    %s65 = sphi 0, %s62
    %s66 = sphi 0, %s65
    %s82 = sphi 0, %s66
    %s86 = sphi 0, %s86
    %s88 = sphi 0, %s86
    %s89 = sphi 0, %s88
    %s103 = sphi 0, %s89
    %s109 = sphi 0, %s111
    %s112 = sphi 0, %s109
    %s113 = sphi 0, %s112
    %s129 = sphi 0, %s113
    %s133 = sphi 0, %s133
    %s135 = sphi 0, %s133
    %s136 = sphi 0, %s135
    %s150 = sphi 0, %s136
    %s154 = sphi 0, %s154
    %s156 = sphi 0, %s154
    %s157 = sphi 0, %s156
    %s171 = sphi 0, %s157
    %s177 = sphi 0, %s179
    %s180 = sphi 0, %s177
    %s181 = sphi 0, %s180
    %s197 = sphi 0, %s181
  $region4: #{_lambda_.11} parent=0 // loop_header_branch
    %15 = sbr.rel (%p13) target = $region8
  $region5: #{_lambda_.11} parent=0 // loop_body
    %s17 = ssub.s32 %s12, 1
    %s18 = ssub.s32 %s12, 2
    %s25 = sadd.s32 1, %s20
    %p26 = scmp.ge.s32.totalorder %s25, 4
    %s27 = scalar_select %p26, 0, %s25
    %s28 = sadd.s32 1, %s19
    %s29 = scalar_select %p26, %s28, %s19
    %p30 = scmp.ge.s32.totalorder %s29, 1
    %s31 = scalar_select %p30, 0, %s29
    %s32 = ssub.s32 %s20, %s27
    %s33 = ssub.s32 %s19, %s31
    %s34 = sor.u32 %s32, %s33
    %p35 = scmp.eq.s32.totalorder %s34, 0
    %s37 = sadd.s32 %s36, 1
    %s38 = scalar_select %p35, %s36, %s37
    %p41 = pneg %p35
    %p42 = scmp.eq.s32.totalorder %s12, 3
    %p43 = por %p41, %p42
    %p44 = scmp.ne.s32.totalorder %s36, %s39
    %p45 = scmp.eq.s32.totalorder %s12, 0
    %p46 = por %p44, %p45
    %p47 = scmp.ne.s32.totalorder %s36, %s39
    %p48 = scmp.eq.s32.totalorder %s17, 3
    %p49 = por %p47, %p48
    %p50 = scmp.ne.s32.totalorder %s39, %s40
    %p51 = scmp.eq.s32.totalorder %s17, 0
    %p52 = por %p50, %p51
    %p53 = scmp.ne.s32.totalorder %s39, %s40
    %p54 = scmp.eq.s32.totalorder %s18, 3
    %p55 = por %p53, %p54
    %p57 = scmp.ne.s32.totalorder %s40, %s56
    %p58 = scmp.eq.s32.totalorder %s18, 0
    %p59 = por %p57, %p58
    %s60 = ssub.s32 %s20, %s27
    %p61 = scmp.eq.s32.totalorder %s60, 0
    %s63 = sadd.s32 %s62, 1
    %s64 = scalar_select %p61, %s62, %s63
    %p67 = pneg %p61
    %p68 = scmp.eq.s32.totalorder %s12, 3
    %p69 = por %p67, %p68
    %p70 = scmp.ne.s32.totalorder %s62, %s65
    %p71 = scmp.eq.s32.totalorder %s12, 0
    %p72 = por %p70, %p71
    %p73 = scmp.ne.s32.totalorder %s62, %s65
    %p74 = scmp.eq.s32.totalorder %s17, 3
    %p75 = por %p73, %p74
    %p76 = scmp.ne.s32.totalorder %s65, %s66
    %p77 = scmp.eq.s32.totalorder %s17, 0
    %p78 = por %p76, %p77
    %p79 = scmp.ne.s32.totalorder %s65, %s66
    %p80 = scmp.eq.s32.totalorder %s18, 3
    %p81 = por %p79, %p80
    %p83 = scmp.ne.s32.totalorder %s66, %s82
    %p84 = scmp.eq.s32.totalorder %s18, 0
    %p85 = por %p83, %p84
    %s87 = sadd.s32 %s86, 1
    %p90 = scmp.eq.s32.totalorder %s12, 3
    %p91 = scmp.ne.s32.totalorder %s86, %s88
    %p92 = scmp.eq.s32.totalorder %s12, 0
    %p93 = por %p91, %p92
    %p94 = scmp.ne.s32.totalorder %s86, %s88
    %p95 = scmp.eq.s32.totalorder %s17, 3
    %p96 = por %p94, %p95
    %p97 = scmp.ne.s32.totalorder %s88, %s89
    %p98 = scmp.eq.s32.totalorder %s17, 0
    %p99 = por %p97, %p98
    %p100 = scmp.ne.s32.totalorder %s88, %s89
    %p101 = scmp.eq.s32.totalorder %s18, 3
    %p102 = por %p100, %p101
    %p104 = scmp.ne.s32.totalorder %s89, %s103
    %p105 = scmp.eq.s32.totalorder %s18, 0
    %p106 = por %p104, %p105
    %s107 = ssub.s32 %s19, %s31
    %p108 = scmp.eq.s32.totalorder %s107, 0
    %s110 = sadd.s32 %s109, 1
    %s111 = scalar_select %p108, %s109, %s110
    %p114 = pneg %p108
    %p115 = scmp.eq.s32.totalorder %s12, 3
    %p116 = por %p114, %p115
    %p117 = scmp.ne.s32.totalorder %s109, %s112
    %p118 = scmp.eq.s32.totalorder %s12, 0
    %p119 = por %p117, %p118
    %p120 = scmp.ne.s32.totalorder %s109, %s112
    %p121 = scmp.eq.s32.totalorder %s17, 3
    %p122 = por %p120, %p121
    %p123 = scmp.ne.s32.totalorder %s112, %s113
    %p124 = scmp.eq.s32.totalorder %s17, 0
    %p125 = por %p123, %p124
    %p126 = scmp.ne.s32.totalorder %s112, %s113
    %p127 = scmp.eq.s32.totalorder %s18, 3
    %p128 = por %p126, %p127
    %p130 = scmp.ne.s32.totalorder %s113, %s129
    %p131 = scmp.eq.s32.totalorder %s18, 0
    %p132 = por %p130, %p131
    %s134 = sadd.s32 %s133, 1
    %p137 = scmp.eq.s32.totalorder %s12, 3
    %p138 = scmp.ne.s32.totalorder %s133, %s135
    %p139 = scmp.eq.s32.totalorder %s12, 0
    %p140 = por %p138, %p139
    %p141 = scmp.ne.s32.totalorder %s133, %s135
    %p142 = scmp.eq.s32.totalorder %s17, 3
    %p143 = por %p141, %p142
    %p144 = scmp.ne.s32.totalorder %s135, %s136
    %p145 = scmp.eq.s32.totalorder %s17, 0
    %p146 = por %p144, %p145
    %p147 = scmp.ne.s32.totalorder %s135, %s136
    %p148 = scmp.eq.s32.totalorder %s18, 3
    %p149 = por %p147, %p148
    %p151 = scmp.ne.s32.totalorder %s136, %s150
    %p152 = scmp.eq.s32.totalorder %s18, 0
    %p153 = por %p151, %p152
    %s155 = sadd.s32 %s154, 1
    %p158 = scmp.eq.s32.totalorder %s12, 3
    %p159 = scmp.ne.s32.totalorder %s154, %s156
    %p160 = scmp.eq.s32.totalorder %s12, 0
    %p161 = por %p159, %p160
    %p162 = scmp.ne.s32.totalorder %s154, %s156
    %p163 = scmp.eq.s32.totalorder %s17, 3
    %p164 = por %p162, %p163
    %p165 = scmp.ne.s32.totalorder %s156, %s157
    %p166 = scmp.eq.s32.totalorder %s17, 0
    %p167 = por %p165, %p166
    %p168 = scmp.ne.s32.totalorder %s156, %s157
    %p169 = scmp.eq.s32.totalorder %s18, 3
    %p170 = por %p168, %p169
    %p172 = scmp.ne.s32.totalorder %s157, %s171
    %p173 = scmp.eq.s32.totalorder %s18, 0
    %p174 = por %p172, %p173
    %s175 = ssub.s32 %s19, %s31
    %p176 = scmp.eq.s32.totalorder %s175, 0
    %s178 = sadd.s32 %s177, 1
    %s179 = scalar_select %p176, %s177, %s178
    %p182 = pneg %p176
    %p183 = scmp.eq.s32.totalorder %s12, 3
    %p184 = por %p182, %p183
    %p185 = scmp.ne.s32.totalorder %s177, %s180
    %p186 = scmp.eq.s32.totalorder %s12, 0
    %p187 = por %p185, %p186
    %p188 = scmp.ne.s32.totalorder %s177, %s180
    %p189 = scmp.eq.s32.totalorder %s17, 3
    %p190 = por %p188, %p189
    %p191 = scmp.ne.s32.totalorder %s180, %s181
    %p192 = scmp.eq.s32.totalorder %s17, 0
    %p193 = por %p191, %p192
    %p194 = scmp.ne.s32.totalorder %s180, %s181
    %p195 = scmp.eq.s32.totalorder %s18, 3
    %p196 = por %p194, %p195
    %p198 = scmp.ne.s32.totalorder %s181, %s197
    %p199 = scmp.eq.s32.totalorder %s18, 0
    %p200 = por %p198, %p199
    %p201 = scmp.le.s32.totalorder 1, %s12
    %p202 = scmp.lt.s32.totalorder %s12, 5
    %p203 = pnand %p201, %p202
    %p204 = pneg %p203
    // Predicated region
    $region9: #{_lambda_.11} parent=5 // pred_check
      _
    $region10: #{_lambda_.11} parent=5 // pred_check_branch
      %206 = sbr.rel (%p203) target = $region12
    $region11: #{_lambda_.11} parent=5 // pred_region
      %s207 = ssub.s32 %s12, 1
      // Predicated region
      $region13: #{_lambda_.11} parent=11 // pred_check
        %p208 = pneg %p99
      $region14: #{_lambda_.11} parent=11 // pred_check_branch
        %210 = sbr.rel (%p208) target = $region16
      $region15: #{_lambda_.11} parent=11 // pred_region
        _
      $region16: #{_lambda_.11} parent=11 // pred_fallthru
        _
      // Predicated region
      $region17: #{_lambda_.11} parent=11 // pred_check
        %p211 = pneg %p125
      $region18: #{_lambda_.11} parent=11 // pred_check_branch
        %213 = sbr.rel (%p211) target = $region20
      $region19: #{_lambda_.11} parent=11 // pred_region
        %s214 = smul.u32 2, %s21
        %p215 = scmp.lt.s32.totalorder %s214, 1
        %s216 = scalar_select %p215, %s214, 1
        %s217 = smul.addr %s216, 4
        %s218 = scalar_lea.vmem %s3, %s217
        %s219 = smul.u32 2, %s21
      $region20: #{_lambda_.11} parent=11 // pred_fallthru
        _
      // Predicated region
      $region21: #{_lambda_.11} parent=11 // pred_check
        %p220 = pneg %p146
      $region22: #{_lambda_.11} parent=11 // pred_check_branch
        %222 = sbr.rel (%p220) target = $region24
      $region23: #{_lambda_.11} parent=11 // pred_region
        _
      $region24: #{_lambda_.11} parent=11 // pred_fallthru
        _
      // Predicated region
      $region25: #{_lambda_.11} parent=11 // pred_check
        %p223 = pneg %p167
      $region26: #{_lambda_.11} parent=11 // pred_check_branch
        %225 = sbr.rel (%p223) target = $region28
      $region27: #{_lambda_.11} parent=11 // pred_region
        _
      $region28: #{_lambda_.11} parent=11 // pred_fallthru
        _
    $region12: #{_lambda_.11} parent=5 // pred_fallthru
      _
    %p226 = scmp.lt.s32.totalorder %s12, 4
    // Predicated region
    $region29: #{_lambda_.11} parent=5 // pred_check
      %p227 = pneg %p226
    $region30: #{_lambda_.11} parent=5 // pred_check_branch
      %229 = sbr.rel (%p227) target = $region32
    $region31: #{_lambda_.11} parent=5 // pred_region
      // Predicated region
      $region33: #{_lambda_.11} parent=31 // pred_check
        %p230 = pneg %p46
      $region34: #{_lambda_.11} parent=31 // pred_check_branch
        %232 = sbr.rel (%p230) target = $region36
      $region35: #{_lambda_.11} parent=31 // pred_region
        %s233 = smul.u32 2, %s19
        %p234 = scmp.lt.s32.totalorder %s20, 3
        %s235 = scalar_select %p234, %s20, 3
        %p236 = scmp.lt.s32.totalorder %s233, 1
        %s237 = scalar_select %p236, %s233, 1
        %s238 = smul.addr %s235, 2
        %s239 = sadd.s32 %s237, %s238
        %s240 = smul.addr %s239, 4
        %s241 = scalar_lea.vmem %s0, %s240
        %s242 = smul.u32 2, %s19
      $region36: #{_lambda_.11} parent=31 // pred_fallthru
        _
      // Predicated region
      $region37: #{_lambda_.11} parent=31 // pred_check
        %p243 = pneg %p72
      $region38: #{_lambda_.11} parent=31 // pred_check_branch
        %245 = sbr.rel (%p243) target = $region40
      $region39: #{_lambda_.11} parent=31 // pred_region
        %p246 = scmp.lt.s32.totalorder %s20, 3
        %s247 = scalar_select %p246, %s20, 3
        %s248 = smul.addr %s247, 2
        %s249 = smul.addr %s248, 4
        %s250 = scalar_lea.vmem %s1, %s249
      $region40: #{_lambda_.11} parent=31 // pred_fallthru
        _
    $region32: #{_lambda_.11} parent=5 // pred_fallthru
      _
    %p251 = scmp.le.s32.totalorder 1, %s12
    %p252 = scmp.lt.s32.totalorder %s12, 5
    %p253 = pnand %p251, %p252
    %p254 = pneg %p253
    // Predicated region
    $region41: #{_lambda_.11} parent=5 // pred_check
      _
    $region42: #{_lambda_.11} parent=5 // pred_check_branch
      %256 = sbr.rel (%p253) target = $region44
    $region43: #{_lambda_.11} parent=5 // pred_region
      %s257 = ssub.s32 %s12, 1
      %s258 = smul.u32 2, %s21
      %p259 = scmp.lt.s32.totalorder %s22, 3
      %s260 = scalar_select %p259, %s22, 3
      %p261 = scmp.lt.s32.totalorder %s258, 1
      %s262 = scalar_select %p261, %s258, 1
      %s263 = smul.addr %s260, 2
      %s264 = sadd.s32 %s262, %s263
      %s265 = smul.addr %s264, 4
      %s266 = scalar_lea.vmem %s0, %s265
      %p267 = pneg %p52
      %p268 = pneg %p49
      %p269 = scmp.lt.s32.totalorder %s22, 3
      %s270 = scalar_select %p269, %s22, 3
      %s271 = smul.addr %s270, 2
      %s272 = smul.addr %s271, 4
      %s273 = scalar_lea.vmem %s1, %s272
      %p274 = pneg %p78
      %p275 = pneg %p75
      %p276 = pneg %p99
      %p277 = pneg %p96
      %s278 = smul.u32 2, %s21
      %p279 = scmp.lt.s32.totalorder %s278, 1
      %s280 = scalar_select %p279, %s278, 1
      %s281 = smul.addr %s280, 4
      %s282 = scalar_lea.vmem %s3, %s281
      %p283 = pneg %p125
      %p284 = pneg %p122
      %p285 = pneg %p146
      %p286 = pneg %p143
      %p287 = pneg %p167
      %p288 = pneg %p164
      %p289 = pneg %p193
      %p290 = pneg %p190
      %s291 = smul.u32 2, %s21
      %p292 = scmp.lt.s32.totalorder %s291, 1
      %s293 = scalar_select %p292, %s291, 1
      %s294 = smul.addr %s293, 4
      %s295 = scalar_lea.vmem %s6, %s294
      %s296 = smul.u32 2, %s21
      %p297 = scmp.lt.s32.totalorder %s22, 3
      %s298 = scalar_select %p297, %s22, 3
      %p299 = scmp.lt.s32.totalorder %s296, 1
      %s300 = scalar_select %p299, %s296, 1
      %s301 = smul.addr %s298, 2
      %s302 = sadd.s32 %s300, %s301
      %s303 = smul.addr %s302, 4
      %s304 = scalar_lea.vmem %s0, %s303
      %s305 = smul.u32 2, %s21
      %p306 = scmp.lt.s32.totalorder %s22, 3
      %s307 = scalar_select %p306, %s22, 3
      %s308 = smul.addr %s307, 2
      %s309 = smul.addr %s308, 4
      %s310 = scalar_lea.vmem %s1, %s309
      %s311 = smul.u32 2, %s21
      %p312 = scmp.lt.s32.totalorder %s311, 1
      %s313 = scalar_select %p312, %s311, 1
      %s314 = smul.addr %s313, 4
      %s315 = scalar_lea.vmem %s3, %s314
      %s316 = smul.u32 2, %s21
      %s317 = smul.u32 2, %s21
      %p318 = scmp.lt.s32.totalorder %s317, 1
      %s319 = scalar_select %p318, %s317, 1
      %s320 = smul.addr %s319, 4
      %s321 = scalar_lea.vmem %s6, %s320
      %s322 = smul.u32 2, %s21
      %p324 = scmp.eq.s32.totalorder %s22, 0
      // Predicated region
      $region45: #{_lambda_.11} parent=43 // pred_check
        %p325 = pneg %p324
      $region46: #{_lambda_.11} parent=43 // pred_check_branch
        %327 = sbr.rel (%p325) target = $region48
      $region47: #{_lambda_.11} parent=43 // pred_region
        %vm328 = vcmask 523264
        %329 = vst.msk [vmem:[#allocation2] sm:$0xff] %vm328, 0.0
        %330 = vst.msk [vmem:[#allocation2 + $0x8] sm:$0xff] %vm328, 0.0
      $region48: #{_lambda_.11} parent=43 // pred_fallthru
        _
      %v331 = vld [vmem:[#allocation2] sm:$0xff]
      %v332 = vld [vmem:[#allocation2 + $0x8] sm:$0xff]
      %v333 = vld [vmem:[%s304] sm:$0xf]
      %v334 = vld [vmem:[%s304 + $0x4] sm:$0xf]
      %v335 = vld [vmem:[%s310] sm:$0xf]
      %v336 = vld [vmem:[%s310 + $0x4] sm:$0xf]
      %v339 = vunpack.c.l.b16 %v333
      %v340 = vunpack.c.l.b16 %v334
      %v341 = vpack.c.b16 %v340, %v339
      %v344 = vunpack.c.l.b16 %v335
      %v345 = vunpack.c.l.b16 %v336
      %v346 = vpack.c.b16 %v345, %v344
      %vm348 = vcmask 130048
      %v350 = vsel %vm348, %v341, 0
      %352 = vmatprep.subr.bf16.mxu0 0
      %353 = vmatpush1.bf16.msra.mxu0 0
      %354 = vmatprep.subr.bf16.mxu0 0
      %355 = vmatpush1.bf16.msra.mxu0 0
      %356 = vmatprep.subr.bf16.mxu0 0
      %357 = vmatpush1.bf16.msra.mxu0 0
      %358 = vmatprep.subr.bf16.mxu0 0
      %359 = vmatpush1.bf16.msra.mxu0 0
      %360 = vmatprep.subr.bf16.mxu0 0
      %361 = vmatpush1.bf16.msra.mxu0 0
      %362 = vmatprep.subr.bf16.mxu0 0
      %363 = vmatpush1.bf16.msra.mxu0 0
      %364 = vmatprep.subr.bf16.mxu0 0
      %365 = vmatpush1.bf16.msra.mxu0 0
      %366 = vmatprep.subr.bf16.mxu0 0
      %367 = vmatpush1.bf16.msra.mxu0 %v346
      %368 = vmatprep.subr.bf16.mxu0 0
      %369 = vmatpush2.bf16.msra.mxu0 0
      %370 = vmatprep.subr.bf16.mxu0 0
      %371 = vmatpush2.bf16.msra.mxu0 0
      %372 = vmatprep.subr.bf16.mxu0 0
      %373 = vmatpush2.bf16.msra.mxu0 0
      %374 = vmatprep.subr.bf16.mxu0 0
      %375 = vmatpush2.bf16.msra.mxu0 0
      %376 = vmatprep.subr.bf16.mxu0 0
      %377 = vmatpush2.bf16.msra.mxu0 0
      %378 = vmatprep.subr.bf16.mxu0 0
      %379 = vmatpush2.bf16.msra.mxu0 0
      %380 = vmatprep.subr.bf16.mxu0 0
      %381 = vmatpush2.bf16.msra.mxu0 0
      %382 = vmatprep.subr.bf16.mxu0 0
      %383 = vmatpush2.bf16.msra.mxu0 0
      %384 = vmatprep.mubr.bf16.mxu0 0
      %385 = vmatmul.mubr.bf16.gmra.mxu0 %v350
      %v386 = vpop.f32.mrf.mxu0
      %v387 = vadd.f32 0.0, %v386
      %v388 = vpop.f32.mrf.mxu0
      %v389 = vpop.f32.mrf.mxu0
      %v390 = vadd.f32 0.0, %v389
      %v391 = vpop.f32.mrf.mxu0
      %392 = vdwg.mxu0
      %v393 = vadd.f32 %v331, %v387
      %v394 = vadd.f32 %v332, %v390
      %vm395 = vcmask 523264
      %396 = vst.msk [vmem:[#allocation2] sm:$0xff] %vm395, %v393
      %397 = vst.msk [vmem:[#allocation2 + $0x8] sm:$0xff] %vm395, %v394
      %p398 = scmp.eq.s32.totalorder %s22, 3
      // Predicated region
      $region49: #{_lambda_.11} parent=43 // pred_check
        %p399 = pneg %p398
      $region50: #{_lambda_.11} parent=43 // pred_check_branch
        %401 = sbr.rel (%p399) target = $region52
      $region51: #{_lambda_.11} parent=43 // pred_region
        %v402 = vld [vmem:[#allocation2] sm:$0xff]
        %v403 = vld [vmem:[#allocation2 + $0x8] sm:$0xff]
        %v404 = vld [vmem:[%s2] sm:$0x1]
        %v406 = vlaneseq
        %v407 = vshrl.u32 %v406, 7
        %v408 = vsub.s32 0, %v407
        %v409 = vrot.slane %v404, %v408
        %v411 = vadd.f32 %v402, %v409
        %v412 = vadd.f32 %v403, %v409
        %v413 = vld [vmem:[%s315] sm:$0xf]
        %v414 = vld [vmem:[%s315 + $0x4] sm:$0xf]
        %v415 = vunpack.c.l.bf16 %v413
        %v416 = vunpack.c.l.bf16 %v414
        %v417 = vadd.f32 %v411, %v415
        %v418 = vadd.f32 %v412, %v416
        %v419 = vsel %vm395, %v417, 0.0
        %420 = vadd.xlane.f32.xlu0 %v419
        %v421 = vpop.xlane.xlu0 %420
        %v422 = vsel %vm395, %v418, 0.0
        %423 = vadd.xlane.f32.xlu0 %v422
        %v424 = vpop.xlane.xlu0 %423
        %v425 = vrcp.pop 64.0
        %v426 = vmul.f32 %v421, %v425
        %v427 = vmul.f32 %v424, %v425
        %v428 = vsub.f32 %v417, %v426
        %v429 = vsub.f32 %v418, %v427
        %v430 = vmul.f32 %v428, %v428
        %v431 = vmul.f32 %v429, %v429
        %v432 = vsel %vm395, %v430, 0.0
        %433 = vadd.xlane.f32.xlu0 %v432
        %v434 = vpop.xlane.xlu0 %433
        %v435 = vsel %vm395, %v431, 0.0
        %436 = vadd.xlane.f32.xlu0 %v435
        %v437 = vpop.xlane.xlu0 %436
        %v438 = vmul.f32 %v434, %v425
        %v439 = vmul.f32 %v437, %v425
        %v440 = vadd.f32 %v438, 1e-05
        %v441 = vadd.f32 %v439, 1e-05
        %v442 = vrsqrt.pop %v440
        %v443 = vrsqrt.pop %v441
        %v444 = vmul.f32 %v428, %v442
        %v445 = vmul.f32 %v429, %v443
        %v446 = vld [vmem:[%s4] sm:$0x1]
        %v448 = vlaneseq
        %v449 = vshrl.u32 %v448, 7
        %v450 = vsub.s32 0, %v449
        %v451 = vrot.slane %v446, %v450
        %v453 = vmul.f32 %v444, %v451
        %v454 = vmul.f32 %v445, %v451
        %v455 = vld [vmem:[%s5] sm:$0x1]
        %v457 = vlaneseq
        %v458 = vshrl.u32 %v457, 7
        %v459 = vsub.s32 0, %v458
        %v460 = vrot.slane %v455, %v459
        %v462 = vadd.f32 %v453, %v460
        %v463 = vadd.f32 %v454, %v460
        %v464 = vpack.c.bf16 %v463, %v462
        %v466 = vunpack.c.l.b16 %v464
        %v467 = vunpack.c.h.b16 %v464
        %v468 = vpack.c.b16 %v466, %v466
        %v469 = vpack.c.b16 %v467, %v467
        %vm472 = vcmask 519168
        %473 = vst.msk [vmem:[%s321] sm:$0xf] %vm472, %v468
        %474 = vst.msk [vmem:[%s321 + $0x4] sm:$0xf] %vm472, %v469
      $region52: #{_lambda_.11} parent=43 // pred_fallthru
        _
      %s475 = smul.u32 2, %s21
      %p476 = scmp.lt.s32.totalorder %s475, 1
      %s477 = scalar_select %p476, %s475, 1
      %s478 = smul.addr %s477, 4
      %s479 = scalar_lea.vmem %s6, %s478
      // Predicated region
      $region53: #{_lambda_.11} parent=43 // pred_check
        %p480 = pneg %p190
      $region54: #{_lambda_.11} parent=43 // pred_check_branch
        %482 = sbr.rel (%p480) target = $region56
      $region55: #{_lambda_.11} parent=43 // pred_region
        %s483 = smul.u32 2, %s21
      $region56: #{_lambda_.11} parent=43 // pred_fallthru
        _
      // Predicated region
      $region57: #{_lambda_.11} parent=43 // pred_check
        %p484 = pneg %p190
      $region58: #{_lambda_.11} parent=43 // pred_check_branch
        %486 = sbr.rel (%p484) target = $region60
      $region59: #{_lambda_.11} parent=43 // pred_region
        %s487 = smul.u32 2, %s21
        %p488 = scmp.lt.s32.totalorder %s487, 1
        %s489 = scalar_select %p488, %s487, 1
        %s490 = smul.addr %s489, 4
        %s491 = scalar_lea.vmem %s6, %s490
      $region60: #{_lambda_.11} parent=43 // pred_fallthru
        _
    $region44: #{_lambda_.11} parent=5 // pred_fallthru
      _
    %p492 = scmp.le.s32.totalorder 2, %s12
    // Predicated region
    $region61: #{_lambda_.11} parent=5 // pred_check
      %p493 = pneg %p492
    $region62: #{_lambda_.11} parent=5 // pred_check_branch
      %495 = sbr.rel (%p493) target = $region64
    $region63: #{_lambda_.11} parent=5 // pred_region
      %s496 = ssub.s32 %s12, 2
    $region64: #{_lambda_.11} parent=5 // pred_fallthru
      _
  $region6: #{_lambda_.11} parent=0 // loop_footer
    %s16 = sadd.s32 1, %s12
  $region7: #{_lambda_.11} parent=0 // loop_footer_branch
    %11 = sbr.rel target = $region3
  $region8: #{_lambda_.11} parent=0 // loop_exit
    _

// kernel: _lambda_.10
$region0: #{_lambda_.10}
  #allocation0 [shape = 'u32[]', space=smem, size = 0x4, offset = 0x4, fixed_abs, tag = 'smem constant byte address 0x4 - core index']
  #allocation1 [shape = 'u32[144,128]{1,0:T(1,128)}', space=vmem, size = 0x12000, scoped, tag = 'internal scratch']
  %s0 = inlined_call_operand.vmem [shape: bf16[12,2,8,16], index: 0, kind: input, shape index: {}, may-alias: {0,1,2}]
  %s1 = inlined_call_operand.vmem [shape: bf16[12,2,8,16], index: 1, kind: input, shape index: {}, may-alias: {0,1,2}]
  %s2 = inlined_call_operand.vmem [shape: bf16[12,2,8,16], index: 2, kind: input, shape index: {}, may-alias: {0,1,2}]
  %s3 = inlined_call_operand.vmem [shape: bf16[4,2,8,16], index: 3, kind: output, shape index: {}]
  %s4 = sld [smem:[#allocation0]]
  $region45: #{_lambda_.10} parent=0
    _
  %s6 = ssub.s32 1, %s4
  %s7 = scalar_select 0, %s6, %s4
  loop: start=0, step=1, limit=10
  $region2: #{_lambda_.10} parent=0 // loop_pre_header
    _
  $region3: #{_lambda_.10} parent=0 // loop_header
    %s9 = sphi 0, %s13
    %p10 = scmp.ge.s32.totalorder %s9, 10
    %s16 = sphi 0, %s28
    %s17 = sphi 0, %s24
    %s18 = sphi 0, %s16
    %s19 = sphi 0, %s17
    %s20 = sphi 0, %s18
    %s21 = sphi 0, %s19
    %s33 = sphi 0, %s35
    %s36 = sphi 0, %s33
    %s37 = sphi 0, %s36
    %s53 = sphi 0, %s37
    %s63 = sphi 0, %s65
    %s66 = sphi 0, %s63
    %s67 = sphi 0, %s66
    %s83 = sphi 0, %s67
    %s93 = sphi 0, %s95
    %s96 = sphi 0, %s93
    %s97 = sphi 0, %s96
    %s113 = sphi 0, %s97
    %s121 = sphi 0, %s123
    %s124 = sphi 0, %s121
    %s125 = sphi 0, %s124
    %s141 = sphi 0, %s125
  $region4: #{_lambda_.10} parent=0 // loop_header_branch
    %12 = sbr.rel (%p10) target = $region8
  $region5: #{_lambda_.10} parent=0 // loop_body
    %s14 = ssub.s32 %s9, 1
    %s15 = ssub.s32 %s9, 2
    %s22 = sadd.s32 1, %s17
    %p23 = scmp.ge.s32.totalorder %s22, 4
    %s24 = scalar_select %p23, 0, %s22
    %s25 = sadd.s32 1, %s16
    %s26 = scalar_select %p23, %s25, %s16
    %p27 = scmp.ge.s32.totalorder %s26, 2
    %s28 = scalar_select %p27, 0, %s26
    %s29 = ssub.s32 %s17, %s24
    %s30 = ssub.s32 %s16, %s28
    %s31 = sor.u32 %s29, %s30
    %p32 = scmp.eq.s32.totalorder %s31, 0
    %s34 = sadd.s32 %s33, 1
    %s35 = scalar_select %p32, %s33, %s34
    %p38 = pneg %p32
    %p39 = scmp.eq.s32.totalorder %s9, 7
    %p40 = por %p38, %p39
    %p41 = scmp.ne.s32.totalorder %s33, %s36
    %p42 = scmp.eq.s32.totalorder %s9, 0
    %p43 = por %p41, %p42
    %p44 = scmp.ne.s32.totalorder %s33, %s36
    %p45 = scmp.eq.s32.totalorder %s14, 7
    %p46 = por %p44, %p45
    %p47 = scmp.ne.s32.totalorder %s36, %s37
    %p48 = scmp.eq.s32.totalorder %s14, 0
    %p49 = por %p47, %p48
    %p50 = scmp.ne.s32.totalorder %s36, %s37
    %p51 = scmp.eq.s32.totalorder %s15, 7
    %p52 = por %p50, %p51
    %p54 = scmp.ne.s32.totalorder %s37, %s53
    %p55 = scmp.eq.s32.totalorder %s15, 0
    %p56 = por %p54, %p55
    %s57 = sadd.s32 %s17, 4
    %s58 = sadd.s32 %s24, 4
    %s59 = ssub.s32 %s57, %s58
    %s60 = ssub.s32 %s16, %s28
    %s61 = sor.u32 %s59, %s60
    %p62 = scmp.eq.s32.totalorder %s61, 0
    %s64 = sadd.s32 %s63, 1
    %s65 = scalar_select %p62, %s63, %s64
    %p68 = pneg %p62
    %p69 = scmp.eq.s32.totalorder %s9, 7
    %p70 = por %p68, %p69
    %p71 = scmp.ne.s32.totalorder %s63, %s66
    %p72 = scmp.eq.s32.totalorder %s9, 0
    %p73 = por %p71, %p72
    %p74 = scmp.ne.s32.totalorder %s63, %s66
    %p75 = scmp.eq.s32.totalorder %s14, 7
    %p76 = por %p74, %p75
    %p77 = scmp.ne.s32.totalorder %s66, %s67
    %p78 = scmp.eq.s32.totalorder %s14, 0
    %p79 = por %p77, %p78
    %p80 = scmp.ne.s32.totalorder %s66, %s67
    %p81 = scmp.eq.s32.totalorder %s15, 7
    %p82 = por %p80, %p81
    %p84 = scmp.ne.s32.totalorder %s67, %s83
    %p85 = scmp.eq.s32.totalorder %s15, 0
    %p86 = por %p84, %p85
    %s87 = sadd.s32 %s17, 8
    %s88 = sadd.s32 %s24, 8
    %s89 = ssub.s32 %s87, %s88
    %s90 = ssub.s32 %s16, %s28
    %s91 = sor.u32 %s89, %s90
    %p92 = scmp.eq.s32.totalorder %s91, 0
    %s94 = sadd.s32 %s93, 1
    %s95 = scalar_select %p92, %s93, %s94
    %p98 = pneg %p92
    %p99 = scmp.eq.s32.totalorder %s9, 7
    %p100 = por %p98, %p99
    %p101 = scmp.ne.s32.totalorder %s93, %s96
    %p102 = scmp.eq.s32.totalorder %s9, 0
    %p103 = por %p101, %p102
    %p104 = scmp.ne.s32.totalorder %s93, %s96
    %p105 = scmp.eq.s32.totalorder %s14, 7
    %p106 = por %p104, %p105
    %p107 = scmp.ne.s32.totalorder %s96, %s97
    %p108 = scmp.eq.s32.totalorder %s14, 0
    %p109 = por %p107, %p108
    %p110 = scmp.ne.s32.totalorder %s96, %s97
    %p111 = scmp.eq.s32.totalorder %s15, 7
    %p112 = por %p110, %p111
    %p114 = scmp.ne.s32.totalorder %s97, %s113
    %p115 = scmp.eq.s32.totalorder %s15, 0
    %p116 = por %p114, %p115
    %s117 = ssub.s32 %s17, %s24
    %s118 = ssub.s32 %s16, %s28
    %s119 = sor.u32 %s117, %s118
    %p120 = scmp.eq.s32.totalorder %s119, 0
    %s122 = sadd.s32 %s121, 1
    %s123 = scalar_select %p120, %s121, %s122
    %p126 = pneg %p120
    %p127 = scmp.eq.s32.totalorder %s9, 7
    %p128 = por %p126, %p127
    %p129 = scmp.ne.s32.totalorder %s121, %s124
    %p130 = scmp.eq.s32.totalorder %s9, 0
    %p131 = por %p129, %p130
    %p132 = scmp.ne.s32.totalorder %s121, %s124
    %p133 = scmp.eq.s32.totalorder %s14, 7
    %p134 = por %p132, %p133
    %p135 = scmp.ne.s32.totalorder %s124, %s125
    %p136 = scmp.eq.s32.totalorder %s14, 0
    %p137 = por %p135, %p136
    %p138 = scmp.ne.s32.totalorder %s124, %s125
    %p139 = scmp.eq.s32.totalorder %s15, 7
    %p140 = por %p138, %p139
    %p142 = scmp.ne.s32.totalorder %s125, %s141
    %p143 = scmp.eq.s32.totalorder %s15, 0
    %p144 = por %p142, %p143
    %p145 = scmp.le.s32.totalorder 1, %s9
    %p146 = scmp.lt.s32.totalorder %s9, 9
    %p147 = pnand %p145, %p146
    %p148 = pneg %p147
    // Predicated region
    $region9: #{_lambda_.10} parent=5 // pred_check
      _
    $region10: #{_lambda_.10} parent=5 // pred_check_branch
      %150 = sbr.rel (%p147) target = $region12
    $region11: #{_lambda_.10} parent=5 // pred_region
      %s151 = ssub.s32 %s9, 1
    $region12: #{_lambda_.10} parent=5 // pred_fallthru
      _
    %p152 = scmp.lt.s32.totalorder %s9, 8
    // Predicated region
    $region13: #{_lambda_.10} parent=5 // pred_check
      %p153 = pneg %p152
    $region14: #{_lambda_.10} parent=5 // pred_check_branch
      %155 = sbr.rel (%p153) target = $region16
    $region15: #{_lambda_.10} parent=5 // pred_region
      // Predicated region
      $region17: #{_lambda_.10} parent=15 // pred_check
        %p156 = pneg %p43
      $region18: #{_lambda_.10} parent=15 // pred_check_branch
        %158 = sbr.rel (%p156) target = $region20
      $region19: #{_lambda_.10} parent=15 // pred_region
        %p159 = scmp.lt.s32.totalorder %s17, 11
        %s160 = scalar_select %p159, %s17, 11
        %p161 = scmp.lt.s32.totalorder %s16, 1
        %s162 = scalar_select %p161, %s16, 1
        %s163 = smul.addr %s160, 2
        %s164 = sadd.s32 %s162, %s163
        %s165 = smul.addr %s164, 4
        %s166 = scalar_lea.vmem %s0, %s165
      $region20: #{_lambda_.10} parent=15 // pred_fallthru
        _
      // Predicated region
      $region21: #{_lambda_.10} parent=15 // pred_check
        %p167 = pneg %p73
      $region22: #{_lambda_.10} parent=15 // pred_check_branch
        %169 = sbr.rel (%p167) target = $region24
      $region23: #{_lambda_.10} parent=15 // pred_region
        %s170 = sadd.s32 %s17, 4
        %p171 = scmp.lt.s32.totalorder %s170, 11
        %s172 = scalar_select %p171, %s170, 11
        %p173 = scmp.lt.s32.totalorder %s16, 1
        %s174 = scalar_select %p173, %s16, 1
        %s175 = smul.addr %s172, 2
        %s176 = sadd.s32 %s174, %s175
        %s177 = smul.addr %s176, 4
        %s178 = scalar_lea.vmem %s1, %s177
        %s179 = sadd.s32 %s17, 4
      $region24: #{_lambda_.10} parent=15 // pred_fallthru
        _
      // Predicated region
      $region25: #{_lambda_.10} parent=15 // pred_check
        %p180 = pneg %p103
      $region26: #{_lambda_.10} parent=15 // pred_check_branch
        %182 = sbr.rel (%p180) target = $region28
      $region27: #{_lambda_.10} parent=15 // pred_region
        %s183 = sadd.s32 %s17, 8
        %p184 = scmp.lt.s32.totalorder %s183, 11
        %s185 = scalar_select %p184, %s183, 11
        %p186 = scmp.lt.s32.totalorder %s16, 1
        %s187 = scalar_select %p186, %s16, 1
        %s188 = smul.addr %s185, 2
        %s189 = sadd.s32 %s187, %s188
        %s190 = smul.addr %s189, 4
        %s191 = scalar_lea.vmem %s2, %s190
        %s192 = sadd.s32 %s17, 8
      $region28: #{_lambda_.10} parent=15 // pred_fallthru
        _
    $region16: #{_lambda_.10} parent=5 // pred_fallthru
      _
    %p193 = scmp.le.s32.totalorder 1, %s9
    %p194 = scmp.lt.s32.totalorder %s9, 9
    %p195 = pnand %p193, %p194
    %p196 = pneg %p195
    // Predicated region
    $region29: #{_lambda_.10} parent=5 // pred_check
      _
    $region30: #{_lambda_.10} parent=5 // pred_check_branch
      %198 = sbr.rel (%p195) target = $region32
    $region31: #{_lambda_.10} parent=5 // pred_region
      %s199 = ssub.s32 %s9, 1
      %p200 = scmp.lt.s32.totalorder %s19, 11
      %s201 = scalar_select %p200, %s19, 11
      %p202 = scmp.lt.s32.totalorder %s18, 1
      %s203 = scalar_select %p202, %s18, 1
      %s204 = smul.addr %s201, 2
      %s205 = sadd.s32 %s203, %s204
      %s206 = smul.addr %s205, 4
      %s207 = scalar_lea.vmem %s0, %s206
      %p208 = pneg %p49
      %p209 = pneg %p46
      %s210 = sadd.s32 %s19, 4
      %p211 = scmp.lt.s32.totalorder %s210, 11
      %s212 = scalar_select %p211, %s210, 11
      %p213 = scmp.lt.s32.totalorder %s18, 1
      %s214 = scalar_select %p213, %s18, 1
      %s215 = smul.addr %s212, 2
      %s216 = sadd.s32 %s214, %s215
      %s217 = smul.addr %s216, 4
      %s218 = scalar_lea.vmem %s1, %s217
      %p219 = pneg %p79
      %p220 = pneg %p76
      %s221 = sadd.s32 %s19, 8
      %p222 = scmp.lt.s32.totalorder %s221, 11
      %s223 = scalar_select %p222, %s221, 11
      %p224 = scmp.lt.s32.totalorder %s18, 1
      %s225 = scalar_select %p224, %s18, 1
      %s226 = smul.addr %s223, 2
      %s227 = sadd.s32 %s225, %s226
      %s228 = smul.addr %s227, 4
      %s229 = scalar_lea.vmem %s2, %s228
      %p230 = pneg %p109
      %p231 = pneg %p106
      %p232 = pneg %p137
      %p233 = pneg %p134
      %p234 = scmp.lt.s32.totalorder %s19, 3
      %s235 = scalar_select %p234, %s19, 3
      %p236 = scmp.lt.s32.totalorder %s18, 1
      %s237 = scalar_select %p236, %s18, 1
      %s238 = smul.addr %s235, 2
      %s239 = sadd.s32 %s237, %s238
      %s240 = smul.addr %s239, 4
      %s241 = scalar_lea.vmem %s3, %s240
      %p242 = scmp.lt.s32.totalorder %s19, 11
      %s243 = scalar_select %p242, %s19, 11
      %p244 = scmp.lt.s32.totalorder %s18, 1
      %s245 = scalar_select %p244, %s18, 1
      %s246 = smul.addr %s243, 2
      %s247 = sadd.s32 %s245, %s246
      %s248 = smul.addr %s247, 4
      %s249 = scalar_lea.vmem %s0, %s248
      %s250 = sadd.s32 %s19, 4
      %p251 = scmp.lt.s32.totalorder %s250, 11
      %s252 = scalar_select %p251, %s250, 11
      %p253 = scmp.lt.s32.totalorder %s18, 1
      %s254 = scalar_select %p253, %s18, 1
      %s255 = smul.addr %s252, 2
      %s256 = sadd.s32 %s254, %s255
      %s257 = smul.addr %s256, 4
      %s258 = scalar_lea.vmem %s1, %s257
      %s259 = sadd.s32 %s19, 4
      %s260 = sadd.s32 %s19, 8
      %p261 = scmp.lt.s32.totalorder %s260, 11
      %s262 = scalar_select %p261, %s260, 11
      %p263 = scmp.lt.s32.totalorder %s18, 1
      %s264 = scalar_select %p263, %s18, 1
      %s265 = smul.addr %s262, 2
      %s266 = sadd.s32 %s264, %s265
      %s267 = smul.addr %s266, 4
      %s268 = scalar_lea.vmem %s2, %s267
      %s269 = sadd.s32 %s19, 8
      %p270 = scmp.lt.s32.totalorder %s19, 3
      %s271 = scalar_select %p270, %s19, 3
      %p272 = scmp.lt.s32.totalorder %s18, 1
      %s273 = scalar_select %p272, %s18, 1
      %s274 = smul.addr %s271, 2
      %s275 = sadd.s32 %s273, %s274
      %s276 = smul.addr %s275, 4
      %s277 = scalar_lea.vmem %s3, %s276
      %v279 = vld [vmem:[%s249] sm:$0xf]
      %v280 = vld [vmem:[%s258] sm:$0xf]
      %v281 = vld [vmem:[%s268] sm:$0xf]
      %vm282 = vcmask 130048
      %v284 = vsel %vm282, %v279, 0
      %v287 = vsel %vm282, %v280, 0
      %289 = vmatprep.subr.bf16.mxu0 0
      %290 = vmatpush1.bf16.xpose.msra.mxu0 0
      %291 = vmatprep.subr.bf16.mxu0 0
      %292 = vmatpush1.bf16.xpose.msra.mxu0 0
      %293 = vmatprep.subr.bf16.mxu0 0
      %294 = vmatpush1.bf16.xpose.msra.mxu0 0
      %295 = vmatprep.subr.bf16.mxu0 0
      %296 = vmatpush1.bf16.xpose.msra.mxu0 0
      %297 = vmatprep.subr.bf16.mxu0 0
      %298 = vmatpush1.bf16.xpose.msra.mxu0 0
      %299 = vmatprep.subr.bf16.mxu0 0
      %300 = vmatpush1.bf16.xpose.msra.mxu0 0
      %301 = vmatprep.subr.bf16.mxu0 0
      %302 = vmatpush1.bf16.xpose.msra.mxu0 0
      %303 = vmatprep.subr.bf16.mxu0 0
      %304 = vmatpush1.bf16.xpose.msra.mxu0 %v287
      %305 = vmatprep.subr.bf16.mxu0 0
      %306 = vmatpush2.bf16.xpose.msra.mxu0 0
      %307 = vmatprep.subr.bf16.mxu0 0
      %308 = vmatpush2.bf16.xpose.msra.mxu0 0
      %309 = vmatprep.subr.bf16.mxu0 0
      %310 = vmatpush2.bf16.xpose.msra.mxu0 0
      %311 = vmatprep.subr.bf16.mxu0 0
      %312 = vmatpush2.bf16.xpose.msra.mxu0 0
      %313 = vmatprep.subr.bf16.mxu0 0
      %314 = vmatpush2.bf16.xpose.msra.mxu0 0
      %315 = vmatprep.subr.bf16.mxu0 0
      %316 = vmatpush2.bf16.xpose.msra.mxu0 0
      %317 = vmatprep.subr.bf16.mxu0 0
      %318 = vmatpush2.bf16.xpose.msra.mxu0 0
      %319 = vmatprep.subr.bf16.mxu0 0
      %320 = vmatpush2.bf16.xpose.msra.mxu0 0
      %321 = vmatprep.mubr.bf16.mxu0 0
      %322 = vmatmul.mubr.bf16.gmra.mxu0 %v284
      %v323 = vpop.f32.mrf.mxu0
      %v324 = vadd.f32 0.0, %v323
      %v325 = vpop.f32.mrf.mxu0
      %v326 = vpop.f32.mrf.mxu0
      %v327 = vpop.f32.mrf.mxu0
      %328 = vdwg.mxu0
      %v329 = vmul.f32 %v324, 0.25
      %v330 = vlaneseq
      %v331 = vshrl.u32 %v330, 7
      %v332 = vlaneseq
      %v333 = vand.u32 %v332, 127
      %vm334 = vcmp.gt.s32.totalorder %v333, %v331
      %v335 = vsel %vm334, -inf, %v329
      %vm336 = vcmask 64512
      %v337 = vsel %vm336, %v335, -inf
      %338 = vmax.xlane.f32.xlu0 %v337
      %v339 = vpop.xlane.xlu0 %338
      %v340 = vsub.f32 %v335, %v339
      %v341 = vmul.f32 %v340, 1.442695
      %v342 = vpow.pop %v341
      %v343 = vsel %vm336, %v342, 0.0
      %344 = vadd.xlane.f32.xlu0 %v343
      %v345 = vpop.xlane.xlu0 %344
      %v346 = vrcp.pop %v345
      %v347 = vmul.f32 %v342, %v346
      %v348 = vpack.c.bf16 %v347, %v347
      %v350 = vsel %vm336, %v348, 0
      %vm352 = vcmask 1043456
      %v354 = vsel %vm352, %v281, 0
      %356 = vmatprep.subr.bf16.mxu0 0
      %357 = vmatpush1.bf16.msra.mxu0 0
      %358 = vmatprep.subr.bf16.mxu0 0
      %359 = vmatpush1.bf16.msra.mxu0 0
      %360 = vmatprep.subr.bf16.mxu0 0
      %361 = vmatpush1.bf16.msra.mxu0 0
      %362 = vmatprep.subr.bf16.mxu0 0
      %363 = vmatpush1.bf16.msra.mxu0 0
      %364 = vmatprep.subr.bf16.mxu0 0
      %365 = vmatpush1.bf16.msra.mxu0 0
      %366 = vmatprep.subr.bf16.mxu0 0
      %367 = vmatpush1.bf16.msra.mxu0 0
      %368 = vmatprep.subr.bf16.mxu0 0
      %369 = vmatpush1.bf16.msra.mxu0 0
      %370 = vmatprep.subr.bf16.mxu0 0
      %371 = vmatpush1.bf16.msra.mxu0 %v354
      %372 = vmatprep.subr.bf16.mxu0 0
      %373 = vmatpush2.bf16.msra.mxu0 0
      %374 = vmatprep.subr.bf16.mxu0 0
      %375 = vmatpush2.bf16.msra.mxu0 0
      %376 = vmatprep.subr.bf16.mxu0 0
      %377 = vmatpush2.bf16.msra.mxu0 0
      %378 = vmatprep.subr.bf16.mxu0 0
      %379 = vmatpush2.bf16.msra.mxu0 0
      %380 = vmatprep.subr.bf16.mxu0 0
      %381 = vmatpush2.bf16.msra.mxu0 0
      %382 = vmatprep.subr.bf16.mxu0 0
      %383 = vmatpush2.bf16.msra.mxu0 0
      %384 = vmatprep.subr.bf16.mxu0 0
      %385 = vmatpush2.bf16.msra.mxu0 0
      %386 = vmatprep.subr.bf16.mxu0 0
      %387 = vmatpush2.bf16.msra.mxu0 0
      %388 = vmatprep.mubr.bf16.mxu0 0
      %389 = vmatmul.mubr.bf16.gmra.mxu0 %v350
      %v390 = vpop.f32.mrf.mxu0
      %v391 = vadd.f32 0.0, %v390
      %v392 = vpop.f32.mrf.mxu0
      %v393 = vpop.f32.mrf.mxu0
      %v394 = vpop.f32.mrf.mxu0
      %395 = vdwg.mxu0
      %v396 = vpack.c.bf16 %v391, %v391
      %vm397 = vcmask 125952
      %398 = vst.msk [vmem:[%s277] sm:$0xf] %vm397, %v396
      %p399 = scmp.lt.s32.totalorder %s19, 3
      %s400 = scalar_select %p399, %s19, 3
      %p401 = scmp.lt.s32.totalorder %s18, 1
      %s402 = scalar_select %p401, %s18, 1
      %s403 = smul.addr %s400, 2
      %s404 = sadd.s32 %s402, %s403
      %s405 = smul.addr %s404, 4
      %s406 = scalar_lea.vmem %s3, %s405
      // Predicated region
      $region33: #{_lambda_.10} parent=31 // pred_check
        %p407 = pneg %p134
      $region34: #{_lambda_.10} parent=31 // pred_check_branch
        %409 = sbr.rel (%p407) target = $region36
      $region35: #{_lambda_.10} parent=31 // pred_region
        _
      $region36: #{_lambda_.10} parent=31 // pred_fallthru
        _
    $region32: #{_lambda_.10} parent=5 // pred_fallthru
      _
    %p410 = scmp.le.s32.totalorder 2, %s9
    // Predicated region
    $region37: #{_lambda_.10} parent=5 // pred_check
      %p411 = pneg %p410
    $region38: #{_lambda_.10} parent=5 // pred_check_branch
      %413 = sbr.rel (%p411) target = $region40
    $region39: #{_lambda_.10} parent=5 // pred_region
      %s414 = ssub.s32 %s9, 2
      // Predicated region
      $region41: #{_lambda_.10} parent=39 // pred_check
        %p415 = pneg %p140
      $region42: #{_lambda_.10} parent=39 // pred_check_branch
        %417 = sbr.rel (%p415) target = $region44
      $region43: #{_lambda_.10} parent=39 // pred_region
        %p418 = scmp.lt.s32.totalorder %s21, 3
        %s419 = scalar_select %p418, %s21, 3
        %p420 = scmp.lt.s32.totalorder %s20, 1
        %s421 = scalar_select %p420, %s20, 1
        %s422 = smul.addr %s419, 2
        %s423 = sadd.s32 %s421, %s422
        %s424 = smul.addr %s423, 4
        %s425 = scalar_lea.vmem %s3, %s424
      $region44: #{_lambda_.10} parent=39 // pred_fallthru
        _
    $region40: #{_lambda_.10} parent=5 // pred_fallthru
      _
  $region6: #{_lambda_.10} parent=0 // loop_footer
    %s13 = sadd.s32 1, %s9
  $region7: #{_lambda_.10} parent=0 // loop_footer_branch
    %8 = sbr.rel target = $region3
  $region8: #{_lambda_.10} parent=0 // loop_exit
    _

// kernel: _lambda_.9
$region0: #{_lambda_.9}
  #allocation0 [shape = 'u32[]', space=smem, size = 0x4, offset = 0x4, fixed_abs, tag = 'smem constant byte address 0x4 - core index']
  #allocation1 [shape = 'u32[144,128]{1,0:T(1,128)}', space=vmem, size = 0x12000, scoped, tag = 'internal scratch']
  %s0 = inlined_call_operand.vmem [shape: bf16[16,64], index: 0, kind: input, shape index: {}]
  %s1 = inlined_call_operand.hbm [shape: bf16[12,64,16], index: 1, kind: input, shape index: {}]
  %s2 = inlined_call_operand.vmem [shape: f32[12,1,16], index: 2, kind: input, shape index: {}]
  %s3 = inlined_call_operand.vmem [shape: bf16[12,16,16], index: 3, kind: output, shape index: {}]
  %s4 = sld [smem:[#allocation0]]
  $region49: #{_lambda_.9} parent=0
    _
  %s6 = ssub.s32 1, %s4
  %s7 = scalar_select 0, %s6, %s4
  $region1: #{_lambda_.9} parent=0
    #allocation2 [shape = 'u8[32768]{0}', space=vmem, size = 0x8000, scoped, tag = 'input window, operand 1']
    #allocation3 [shape = 's32[2]{0}', space=sflag, size = 0x8, scoped, tag = 'scoped memory for _lambda_.9']
    %8 = vsyncpa [#allocation3], 0
    %s9 = scalar_lea.sflag [#allocation3], 1
    %10 = vsyncpa %s9, 0
    loop: start=0, step=1, limit=14
    $region2: #{_lambda_.9} parent=1 // loop_pre_header
      _
    $region3: #{_lambda_.9} parent=1 // loop_header
      %s12 = sphi 0, %s16
      %p13 = scmp.ge.s32.totalorder %s12, 14
      %s19 = sphi 0, %s31
      %s20 = sphi 0, %s27
      %s21 = sphi 0, %s19
      %s22 = sphi 0, %s20
      %s23 = sphi 0, %s21
      %s24 = sphi 0, %s22
      %s34 = sphi 0, %s36
      %s37 = sphi 0, %s34
      %s38 = sphi 0, %s37
      %s54 = sphi 0, %s38
      %s60 = sphi 0, %s62
      %s63 = sphi 0, %s60
      %s64 = sphi 0, %s63
      %s80 = sphi 0, %s64
      %s86 = sphi 0, %s88
      %s89 = sphi 0, %s86
      %s90 = sphi 0, %s89
      %s106 = sphi 0, %s90
      %s114 = sphi 0, %s116
      %s117 = sphi 0, %s114
      %s118 = sphi 0, %s117
      %s134 = sphi 0, %s118
    $region4: #{_lambda_.9} parent=1 // loop_header_branch
      %15 = sbr.rel (%p13) target = $region8
    $region5: #{_lambda_.9} parent=1 // loop_body
      %s17 = ssub.s32 %s12, 1
      %s18 = ssub.s32 %s12, 2
      %s25 = sadd.s32 1, %s20
      %p26 = scmp.ge.s32.totalorder %s25, 12
      %s27 = scalar_select %p26, 0, %s25
      %s28 = sadd.s32 1, %s19
      %s29 = scalar_select %p26, %s28, %s19
      %p30 = scmp.ge.s32.totalorder %s29, 1
      %s31 = scalar_select %p30, 0, %s29
      %s32 = ssub.s32 %s19, %s31
      %p33 = scmp.eq.s32.totalorder %s32, 0
      %s35 = sadd.s32 %s34, 1
      %s36 = scalar_select %p33, %s34, %s35
      %p39 = pneg %p33
      %p40 = scmp.eq.s32.totalorder %s12, 11
      %p41 = por %p39, %p40
      %p42 = scmp.ne.s32.totalorder %s34, %s37
      %p43 = scmp.eq.s32.totalorder %s12, 0
      %p44 = por %p42, %p43
      %p45 = scmp.ne.s32.totalorder %s34, %s37
      %p46 = scmp.eq.s32.totalorder %s17, 11
      %p47 = por %p45, %p46
      %p48 = scmp.ne.s32.totalorder %s37, %s38
      %p49 = scmp.eq.s32.totalorder %s17, 0
      %p50 = por %p48, %p49
      %p51 = scmp.ne.s32.totalorder %s37, %s38
      %p52 = scmp.eq.s32.totalorder %s18, 11
      %p53 = por %p51, %p52
      %p55 = scmp.ne.s32.totalorder %s38, %s54
      %p56 = scmp.eq.s32.totalorder %s18, 0
      %p57 = por %p55, %p56
      %s58 = ssub.s32 %s20, %s27
      %p59 = scmp.eq.s32.totalorder %s58, 0
      %s61 = sadd.s32 %s60, 1
      %s62 = scalar_select %p59, %s60, %s61
      %p65 = pneg %p59
      %p66 = scmp.eq.s32.totalorder %s12, 11
      %p67 = por %p65, %p66
      %p68 = scmp.ne.s32.totalorder %s60, %s63
      %p69 = scmp.eq.s32.totalorder %s12, 0
      %p70 = por %p68, %p69
      %p71 = scmp.ne.s32.totalorder %s60, %s63
      %p72 = scmp.eq.s32.totalorder %s17, 11
      %p73 = por %p71, %p72
      %p74 = scmp.ne.s32.totalorder %s63, %s64
      %p75 = scmp.eq.s32.totalorder %s17, 0
      %p76 = por %p74, %p75
      %p77 = scmp.ne.s32.totalorder %s63, %s64
      %p78 = scmp.eq.s32.totalorder %s18, 11
      %p79 = por %p77, %p78
      %p81 = scmp.ne.s32.totalorder %s64, %s80
      %p82 = scmp.eq.s32.totalorder %s18, 0
      %p83 = por %p81, %p82
      %s84 = ssub.s32 %s20, %s27
      %p85 = scmp.eq.s32.totalorder %s84, 0
      %s87 = sadd.s32 %s86, 1
      %s88 = scalar_select %p85, %s86, %s87
      %p91 = pneg %p85
      %p92 = scmp.eq.s32.totalorder %s12, 11
      %p93 = por %p91, %p92
      %p94 = scmp.ne.s32.totalorder %s86, %s89
      %p95 = scmp.eq.s32.totalorder %s12, 0
      %p96 = por %p94, %p95
      %p97 = scmp.ne.s32.totalorder %s86, %s89
      %p98 = scmp.eq.s32.totalorder %s17, 11
      %p99 = por %p97, %p98
      %p100 = scmp.ne.s32.totalorder %s89, %s90
      %p101 = scmp.eq.s32.totalorder %s17, 0
      %p102 = por %p100, %p101
      %p103 = scmp.ne.s32.totalorder %s89, %s90
      %p104 = scmp.eq.s32.totalorder %s18, 11
      %p105 = por %p103, %p104
      %p107 = scmp.ne.s32.totalorder %s90, %s106
      %p108 = scmp.eq.s32.totalorder %s18, 0
      %p109 = por %p107, %p108
      %s110 = ssub.s32 %s20, %s27
      %s111 = ssub.s32 %s19, %s31
      %s112 = sor.u32 %s110, %s111
      %p113 = scmp.eq.s32.totalorder %s112, 0
      %s115 = sadd.s32 %s114, 1
      %s116 = scalar_select %p113, %s114, %s115
      %p119 = pneg %p113
      %p120 = scmp.eq.s32.totalorder %s12, 11
      %p121 = por %p119, %p120
      %p122 = scmp.ne.s32.totalorder %s114, %s117
      %p123 = scmp.eq.s32.totalorder %s12, 0
      %p124 = por %p122, %p123
      %p125 = scmp.ne.s32.totalorder %s114, %s117
      %p126 = scmp.eq.s32.totalorder %s17, 11
      %p127 = por %p125, %p126
      %p128 = scmp.ne.s32.totalorder %s117, %s118
      %p129 = scmp.eq.s32.totalorder %s17, 0
      %p130 = por %p128, %p129
      %p131 = scmp.ne.s32.totalorder %s117, %s118
      %p132 = scmp.eq.s32.totalorder %s18, 11
      %p133 = por %p131, %p132
      %p135 = scmp.ne.s32.totalorder %s118, %s134
      %p136 = scmp.eq.s32.totalorder %s18, 0
      %p137 = por %p135, %p136
      %p138 = scmp.le.s32.totalorder 1, %s12
      %p139 = scmp.lt.s32.totalorder %s12, 13
      %p140 = pnand %p138, %p139
      %p141 = pneg %p140
      // Predicated region
      $region9: #{_lambda_.9} parent=5 // pred_check
        _
      $region10: #{_lambda_.9} parent=5 // pred_check_branch
        %143 = sbr.rel (%p140) target = $region12
      $region11: #{_lambda_.9} parent=5 // pred_region
        %s144 = ssub.s32 %s12, 1
        // Predicated region
        $region13: #{_lambda_.9} parent=11 // pred_check
          %p145 = pneg %p50
        $region14: #{_lambda_.9} parent=11 // pred_check_branch
          %147 = sbr.rel (%p145) target = $region16
        $region15: #{_lambda_.9} parent=11 // pred_region
          %s148 = smul.u32 2, %s21
          %p149 = scmp.lt.s32.totalorder %s148, 1
          %s150 = scalar_select %p149, %s148, 1
          %s151 = smul.addr %s150, 4
          %s152 = scalar_lea.vmem %s0, %s151
          %s153 = smul.u32 2, %s21
        $region16: #{_lambda_.9} parent=11 // pred_fallthru
          _
      $region12: #{_lambda_.9} parent=5 // pred_fallthru
        _
      %p154 = scmp.lt.s32.totalorder %s12, 12
      // Predicated region
      $region17: #{_lambda_.9} parent=5 // pred_check
        %p155 = pneg %p154
      $region18: #{_lambda_.9} parent=5 // pred_check_branch
        %157 = sbr.rel (%p155) target = $region20
      $region19: #{_lambda_.9} parent=5 // pred_region
        // Predicated region
        $region21: #{_lambda_.9} parent=19 // pred_check
          %p158 = pneg %p70
        $region22: #{_lambda_.9} parent=19 // pred_check_branch
          %160 = sbr.rel (%p158) target = $region24
        $region23: #{_lambda_.9} parent=19 // pred_region
          %s161 = sand.u32 %s60, 1
          %s162 = scalar_lea.sflag [#allocation3], %s161
          %s163 = sand.u32 %s60, 1
          %s164 = smul.addr %s163, 32
          %s165 = scalar_lea.vmem [#allocation2], %s164
          %s167 = ssub.s32 512, 512
          %168 = vsyncadd %s162, %s167
          %s169 = smul.addr %s20, 8
          %s170 = smul.addr %s169, 64
          %s171 = scalar_lea.hbm %s1, %s170
          %s172 = sshll.u32 %s165, 4
          %s173 = int_to_ptr.vmem [resolvable:$true] %s172
          %178 = dma.hbm_to_vmem [thread:$0]  %s171, 512, %s173, %s162, 64, 64, 4
        $region24: #{_lambda_.9} parent=19 // pred_fallthru
          _
        // Predicated region
        $region25: #{_lambda_.9} parent=19 // pred_check
          %p179 = pneg %p96
        $region26: #{_lambda_.9} parent=19 // pred_check_branch
          %181 = sbr.rel (%p179) target = $region28
        $region27: #{_lambda_.9} parent=19 // pred_region
          %p182 = scmp.lt.s32.totalorder %s20, 11
          %s183 = scalar_select %p182, %s20, 11
          %s184 = scalar_lea.vmem %s2, %s183
        $region28: #{_lambda_.9} parent=19 // pred_fallthru
          _
      $region20: #{_lambda_.9} parent=5 // pred_fallthru
        _
      %p185 = scmp.le.s32.totalorder 1, %s12
      %p186 = scmp.lt.s32.totalorder %s12, 13
      %p187 = pnand %p185, %p186
      %p188 = pneg %p187
      // Predicated region
      $region29: #{_lambda_.9} parent=5 // pred_check
        _
      $region30: #{_lambda_.9} parent=5 // pred_check_branch
        %190 = sbr.rel (%p187) target = $region32
      $region31: #{_lambda_.9} parent=5 // pred_region
        %s191 = ssub.s32 %s12, 1
        %s192 = sand.u32 %s63, 1
        %s193 = scalar_lea.sflag [#allocation3], %s192
        %s194 = sand.u32 %s63, 1
        %s195 = smul.addr %s194, 32
        %s196 = scalar_lea.vmem [#allocation2], %s195
        // Predicated region
        $region33: #{_lambda_.9} parent=31 // pred_check
          %p197 = pneg %p76
        $region34: #{_lambda_.9} parent=31 // pred_check_branch
          %199 = sbr.rel (%p197) target = $region36
        $region35: #{_lambda_.9} parent=31 // pred_region
          %200 = dma.done %s193, 512
        $region36: #{_lambda_.9} parent=31 // pred_fallthru
          _
        %s201 = smul.u32 2, %s21
        %p202 = scmp.lt.s32.totalorder %s201, 1
        %s203 = scalar_select %p202, %s201, 1
        %s204 = smul.addr %s203, 4
        %s205 = scalar_lea.vmem %s0, %s204
        %p206 = pneg %p50
        %p207 = pneg %p47
        %s208 = sand.u32 %s63, 1
        %s209 = scalar_lea.sflag [#allocation3], %s208
        %s210 = sand.u32 %s63, 1
        %s211 = smul.addr %s210, 32
        %s212 = scalar_lea.vmem [#allocation2], %s211
        %p213 = pneg %p76
        %p214 = pneg %p73
        %p215 = scmp.lt.s32.totalorder %s22, 11
        %s216 = scalar_select %p215, %s22, 11
        %s217 = scalar_lea.vmem %s2, %s216
        %p218 = pneg %p102
        %p219 = pneg %p99
        %p220 = pneg %p130
        %p221 = pneg %p127
        %s222 = smul.u32 2, %s21
        %p223 = scmp.lt.s32.totalorder %s22, 11
        %s224 = scalar_select %p223, %s22, 11
        %p225 = scmp.lt.s32.totalorder %s222, 1
        %s226 = scalar_select %p225, %s222, 1
        %s227 = smul.addr %s224, 2
        %s228 = sadd.s32 %s226, %s227
        %s229 = smul.addr %s228, 4
        %s230 = scalar_lea.vmem %s3, %s229
        %s231 = smul.u32 2, %s21
        %p232 = scmp.lt.s32.totalorder %s231, 1
        %s233 = scalar_select %p232, %s231, 1
        %s234 = smul.addr %s233, 4
        %s235 = scalar_lea.vmem %s0, %s234
        %s236 = smul.u32 2, %s21
        %p237 = scmp.lt.s32.totalorder %s22, 11
        %s238 = scalar_select %p237, %s22, 11
        %s239 = scalar_lea.vmem %s2, %s238
        %s240 = smul.u32 2, %s21
        %p241 = scmp.lt.s32.totalorder %s22, 11
        %s242 = scalar_select %p241, %s22, 11
        %p243 = scmp.lt.s32.totalorder %s240, 1
        %s244 = scalar_select %p243, %s240, 1
        %s245 = smul.addr %s242, 2
        %s246 = sadd.s32 %s244, %s245
        %s247 = smul.addr %s246, 4
        %s248 = scalar_lea.vmem %s3, %s247
        %s249 = smul.u32 2, %s21
        %v251 = vld [vmem:[%s235] sm:$0xf]
        %v252 = vld [vmem:[%s235 + $0x4] sm:$0xf]
        %v253 = vld [vmem:[%s196] sm:$0xf]
        %v254 = vld [vmem:[%s196 + $0x4] sm:$0xf]
        %v255 = vld [vmem:[%s196 + $0x8] sm:$0xf]
        %v256 = vld [vmem:[%s196 + $0xc] sm:$0xf]
        %v257 = vld [vmem:[%s196 + $0x10] sm:$0xf]
        %v258 = vld [vmem:[%s196 + $0x14] sm:$0xf]
        %v259 = vld [vmem:[%s196 + $0x18] sm:$0xf]
        %v260 = vld [vmem:[%s196 + $0x1c] sm:$0xf]
        %v261 = vld [vmem:[%s239] sm:$0x1]
        %v263 = vlaneseq
        %v264 = vshrl.u32 %v263, 7
        %v265 = vsub.s32 0, %v264
        %v266 = vrot.slane %v261, %v265
        %v270 = vunpack.c.l.b16 %v251
        %v271 = vunpack.c.l.b16 %v252
        %v272 = vpack.c.b16 %v271, %v270
        %v281 = vunpack.c.l.b16 %v253
        %v282 = vunpack.c.l.b16 %v254
        %v283 = vunpack.c.l.b16 %v255
        %v284 = vunpack.c.l.b16 %v256
        %v285 = vunpack.c.l.b16 %v257
        %v286 = vunpack.c.l.b16 %v258
        %v287 = vunpack.c.l.b16 %v259
        %v288 = vunpack.c.l.b16 %v260
        %v289 = vpack.c.b16 %v282, %v281
        %v290 = vpack.c.b16 %v284, %v283
        %v291 = vpack.c.b16 %v286, %v285
        %v292 = vpack.c.b16 %v288, %v287
        %vm297 = vcmask 523264
        %v299 = vsel %vm297, %v272, 0
        %301 = vmatprep.subr.bf16.mxu0 0
        %302 = vmatpush1.bf16.msra.mxu0 0
        %303 = vmatprep.subr.bf16.mxu0 0
        %304 = vmatpush1.bf16.msra.mxu0 0
        %305 = vmatprep.subr.bf16.mxu0 0
        %306 = vmatpush1.bf16.msra.mxu0 0
        %307 = vmatprep.subr.bf16.mxu0 0
        %308 = vmatpush1.bf16.msra.mxu0 0
        %309 = vmatprep.subr.bf16.mxu0 0
        %310 = vmatpush1.bf16.msra.mxu0 %v292
        %311 = vmatprep.subr.bf16.mxu0 0
        %312 = vmatpush1.bf16.msra.mxu0 %v291
        %313 = vmatprep.subr.bf16.mxu0 0
        %314 = vmatpush1.bf16.msra.mxu0 %v290
        %315 = vmatprep.subr.bf16.mxu0 0
        %316 = vmatpush1.bf16.msra.mxu0 %v289
        %317 = vmatprep.subr.bf16.mxu0 0
        %318 = vmatpush2.bf16.msra.mxu0 0
        %319 = vmatprep.subr.bf16.mxu0 0
        %320 = vmatpush2.bf16.msra.mxu0 0
        %321 = vmatprep.subr.bf16.mxu0 0
        %322 = vmatpush2.bf16.msra.mxu0 0
        %323 = vmatprep.subr.bf16.mxu0 0
        %324 = vmatpush2.bf16.msra.mxu0 0
        %325 = vmatprep.subr.bf16.mxu0 0
        %326 = vmatpush2.bf16.msra.mxu0 0
        %327 = vmatprep.subr.bf16.mxu0 0
        %328 = vmatpush2.bf16.msra.mxu0 0
        %329 = vmatprep.subr.bf16.mxu0 0
        %330 = vmatpush2.bf16.msra.mxu0 0
        %331 = vmatprep.subr.bf16.mxu0 0
        %332 = vmatpush2.bf16.msra.mxu0 0
        %333 = vmatprep.mubr.bf16.mxu0 0
        %334 = vmatmul.mubr.bf16.gmra.mxu0 %v299
        %v335 = vpop.f32.mrf.mxu0
        %v336 = vadd.f32 %v266, %v335
        %v337 = vpop.f32.mrf.mxu0
        %v338 = vpop.f32.mrf.mxu0
        %v339 = vadd.f32 %v266, %v338
        %v340 = vpop.f32.mrf.mxu0
        %341 = vdwg.mxu0
        %v342 = vpack.c.bf16 %v339, %v336
        %v344 = vunpack.c.l.b16 %v342
        %v345 = vunpack.c.h.b16 %v342
        %v346 = vpack.c.b16 %v344, %v344
        %v347 = vpack.c.b16 %v345, %v345
        %vm350 = vcmask 125952
        %351 = vst.msk [vmem:[%s248] sm:$0xf] %vm350, %v346
        %352 = vst.msk [vmem:[%s248 + $0x4] sm:$0xf] %vm350, %v347
        %s353 = smul.u32 2, %s21
        %p354 = scmp.lt.s32.totalorder %s22, 11
        %s355 = scalar_select %p354, %s22, 11
        %p356 = scmp.lt.s32.totalorder %s353, 1
        %s357 = scalar_select %p356, %s353, 1
        %s358 = smul.addr %s355, 2
        %s359 = sadd.s32 %s357, %s358
        %s360 = smul.addr %s359, 4
        %s361 = scalar_lea.vmem %s3, %s360
        // Predicated region
        $region37: #{_lambda_.9} parent=31 // pred_check
          %p362 = pneg %p127
        $region38: #{_lambda_.9} parent=31 // pred_check_branch
          %364 = sbr.rel (%p362) target = $region40
        $region39: #{_lambda_.9} parent=31 // pred_region
          %s365 = smul.u32 2, %s21
        $region40: #{_lambda_.9} parent=31 // pred_fallthru
          _
      $region32: #{_lambda_.9} parent=5 // pred_fallthru
        _
      %p366 = scmp.le.s32.totalorder 2, %s12
      // Predicated region
      $region41: #{_lambda_.9} parent=5 // pred_check
        %p367 = pneg %p366
      $region42: #{_lambda_.9} parent=5 // pred_check_branch
        %369 = sbr.rel (%p367) target = $region44
      $region43: #{_lambda_.9} parent=5 // pred_region
        %s370 = ssub.s32 %s12, 2
        // Predicated region
        $region45: #{_lambda_.9} parent=43 // pred_check
          %p371 = pneg %p133
        $region46: #{_lambda_.9} parent=43 // pred_check_branch
          %373 = sbr.rel (%p371) target = $region48
        $region47: #{_lambda_.9} parent=43 // pred_region
          %s374 = smul.u32 2, %s23
          %p375 = scmp.lt.s32.totalorder %s24, 11
          %s376 = scalar_select %p375, %s24, 11
          %p377 = scmp.lt.s32.totalorder %s374, 1
          %s378 = scalar_select %p377, %s374, 1
          %s379 = smul.addr %s376, 2
          %s380 = sadd.s32 %s378, %s379
          %s381 = smul.addr %s380, 4
          %s382 = scalar_lea.vmem %s3, %s381
        $region48: #{_lambda_.9} parent=43 // pred_fallthru
          _
      $region44: #{_lambda_.9} parent=5 // pred_fallthru
        _
    $region6: #{_lambda_.9} parent=1 // loop_footer
      %s16 = sadd.s32 1, %s12
    $region7: #{_lambda_.9} parent=1 // loop_footer_branch
      %11 = sbr.rel target = $region3
    $region8: #{_lambda_.9} parent=1 // loop_exit
      _
    %383 = vsyncpa [#allocation3], 1
    %s384 = scalar_lea.sflag [#allocation3], 1
    %385 = vsyncpa %s384, 1

// kernel: _lambda_.12
$region0: #{_lambda_.12}
  #allocation0 [shape = 'u32[]', space=smem, size = 0x4, offset = 0x4, fixed_abs, tag = 'smem constant byte address 0x4 - core index']
  #allocation1 [shape = 'u32[144,128]{1,0:T(1,128)}', space=vmem, size = 0x12000, scoped, tag = 'internal scratch']
  #allocation2 [shape = 'f32[16,64]{1,0:T(8,128)}', space=vmem, size = 0x2000, scoped, tag = 'scratch operand']
  %s0 = inlined_call_operand.vmem [shape: bf16[16,64], index: 0, kind: input, shape index: {}]
  %s1 = inlined_call_operand.vmem [shape: bf16[64,128], index: 1, kind: input, shape index: {}]
  %s2 = inlined_call_operand.vmem [shape: f32[1,128], index: 2, kind: input, shape index: {}]
  %s3 = inlined_call_operand.vmem [shape: bf16[128,64], index: 3, kind: input, shape index: {}]
  %s4 = inlined_call_operand.vmem [shape: f32[1,64], index: 4, kind: input, shape index: {}, may-alias: {4,6}]
  %s5 = inlined_call_operand.vmem [shape: f32[1,64], index: 5, kind: input, shape index: {}]
  %s6 = inlined_call_operand.vmem [shape: f32[1,64], index: 6, kind: input, shape index: {}, may-alias: {4,6}]
  %s7 = inlined_call_operand.vmem [shape: bf16[16,64], index: 7, kind: output, shape index: {}]
  %s8 = sld [smem:[#allocation0]]
  $region46: #{_lambda_.12} parent=0
    _
  %s10 = ssub.s32 1, %s8
  %s11 = scalar_select 0, %s10, %s8
  // Predicated region
  $region2: #{_lambda_.12} parent=0 // pred_check
    _
  $region3: #{_lambda_.12} parent=0 // pred_check_branch
    %13 = sbr.rel (0) target = $region5
  $region4: #{_lambda_.12} parent=0 // pred_region
    _
  $region5: #{_lambda_.12} parent=0 // pred_fallthru
    _
  // Predicated region
  $region6: #{_lambda_.12} parent=0 // pred_check
    _
  $region7: #{_lambda_.12} parent=0 // pred_check_branch
    %15 = sbr.rel (0) target = $region9
  $region8: #{_lambda_.12} parent=0 // pred_region
    _
  $region9: #{_lambda_.12} parent=0 // pred_fallthru
    _
  // Predicated region
  $region10: #{_lambda_.12} parent=0 // pred_check
    _
  $region11: #{_lambda_.12} parent=0 // pred_check_branch
    %17 = sbr.rel (0) target = $region13
  $region12: #{_lambda_.12} parent=0 // pred_region
    _
  $region13: #{_lambda_.12} parent=0 // pred_fallthru
    _
  // Predicated region
  $region14: #{_lambda_.12} parent=0 // pred_check
    _
  $region15: #{_lambda_.12} parent=0 // pred_check_branch
    %19 = sbr.rel (0) target = $region17
  $region16: #{_lambda_.12} parent=0 // pred_region
    _
  $region17: #{_lambda_.12} parent=0 // pred_fallthru
    _
  // Predicated region
  $region18: #{_lambda_.12} parent=0 // pred_check
    _
  $region19: #{_lambda_.12} parent=0 // pred_check_branch
    %21 = sbr.rel (0) target = $region21
  $region20: #{_lambda_.12} parent=0 // pred_region
    _
  $region21: #{_lambda_.12} parent=0 // pred_fallthru
    _
  // Predicated region
  $region22: #{_lambda_.12} parent=0 // pred_check
    _
  $region23: #{_lambda_.12} parent=0 // pred_check_branch
    %23 = sbr.rel (0) target = $region25
  $region24: #{_lambda_.12} parent=0 // pred_region
    _
  $region25: #{_lambda_.12} parent=0 // pred_fallthru
    _
  // Predicated region
  $region26: #{_lambda_.12} parent=0 // pred_check
    _
  $region27: #{_lambda_.12} parent=0 // pred_check_branch
    %25 = sbr.rel (0) target = $region29
  $region28: #{_lambda_.12} parent=0 // pred_region
    _
  $region29: #{_lambda_.12} parent=0 // pred_fallthru
    _
  %p27 = scmp.eq.s32.totalorder 0, 0
  // Predicated region
  $region30: #{_lambda_.12} parent=0 // pred_check
    %p28 = pneg %p27
  $region31: #{_lambda_.12} parent=0 // pred_check_branch
    %30 = sbr.rel (%p28) target = $region33
  $region32: #{_lambda_.12} parent=0 // pred_region
    %vm31 = vcmask 523264
    %32 = vst.msk [vmem:[#allocation2] sm:$0xff] %vm31, 0.0
    %33 = vst.msk [vmem:[#allocation2 + $0x8] sm:$0xff] %vm31, 0.0
  $region33: #{_lambda_.12} parent=0 // pred_fallthru
    _
  %v34 = vld [vmem:[%s0] sm:$0xf]
  %v35 = vld [vmem:[%s0 + $0x4] sm:$0xf]
  %v36 = vld [vmem:[%s1] sm:$0xf]
  %v37 = vld [vmem:[%s1 + $0x4] sm:$0xf]
  %v38 = vld [vmem:[%s1 + $0x8] sm:$0xf]
  %v39 = vld [vmem:[%s1 + $0xc] sm:$0xf]
  %v40 = vld [vmem:[%s1 + $0x10] sm:$0xf]
  %v41 = vld [vmem:[%s1 + $0x14] sm:$0xf]
  %v42 = vld [vmem:[%s1 + $0x18] sm:$0xf]
  %v43 = vld [vmem:[%s1 + $0x1c] sm:$0xf]
  %v44 = vld [vmem:[%s2] sm:$0x1]
  %v46 = vlaneseq
  %v47 = vshrl.u32 %v46, 7
  %v48 = vsub.s32 0, %v47
  %v49 = vrot.slane %v44, %v48
  %v53 = vunpack.c.l.b16 %v34
  %v54 = vunpack.c.l.b16 %v35
  %v55 = vpack.c.b16 %v54, %v53
  %v64 = vunpack.c.l.b16 %v36
  %v65 = vunpack.c.l.b16 %v37
  %v66 = vunpack.c.l.b16 %v38
  %v67 = vunpack.c.l.b16 %v39
  %v68 = vunpack.c.l.b16 %v40
  %v69 = vunpack.c.l.b16 %v41
  %v70 = vunpack.c.l.b16 %v42
  %v71 = vunpack.c.l.b16 %v43
  %v72 = vpack.c.b16 %v65, %v64
  %v73 = vpack.c.b16 %v67, %v66
  %v74 = vpack.c.b16 %v69, %v68
  %v75 = vpack.c.b16 %v71, %v70
  %vm80 = vcmask 523264
  %v82 = vsel %vm80, %v55, 0
  %84 = vmatprep.subr.bf16.mxu0 0
  %85 = vmatpush1.bf16.msra.mxu0 0
  %86 = vmatprep.subr.bf16.mxu0 0
  %87 = vmatpush1.bf16.msra.mxu0 0
  %88 = vmatprep.subr.bf16.mxu0 0
  %89 = vmatpush1.bf16.msra.mxu0 0
  %90 = vmatprep.subr.bf16.mxu0 0
  %91 = vmatpush1.bf16.msra.mxu0 0
  %92 = vmatprep.subr.bf16.mxu0 0
  %93 = vmatpush1.bf16.msra.mxu0 %v75
  %94 = vmatprep.subr.bf16.mxu0 0
  %95 = vmatpush1.bf16.msra.mxu0 %v74
  %96 = vmatprep.subr.bf16.mxu0 0
  %97 = vmatpush1.bf16.msra.mxu0 %v73
  %98 = vmatprep.subr.bf16.mxu0 0
  %99 = vmatpush1.bf16.msra.mxu0 %v72
  %100 = vmatprep.subr.bf16.mxu0 0
  %101 = vmatpush2.bf16.msra.mxu0 0
  %102 = vmatprep.subr.bf16.mxu0 0
  %103 = vmatpush2.bf16.msra.mxu0 0
  %104 = vmatprep.subr.bf16.mxu0 0
  %105 = vmatpush2.bf16.msra.mxu0 0
  %106 = vmatprep.subr.bf16.mxu0 0
  %107 = vmatpush2.bf16.msra.mxu0 0
  %108 = vmatprep.subr.bf16.mxu0 0
  %109 = vmatpush2.bf16.msra.mxu0 0
  %110 = vmatprep.subr.bf16.mxu0 0
  %111 = vmatpush2.bf16.msra.mxu0 0
  %112 = vmatprep.subr.bf16.mxu0 0
  %113 = vmatpush2.bf16.msra.mxu0 0
  %114 = vmatprep.subr.bf16.mxu0 0
  %115 = vmatpush2.bf16.msra.mxu0 0
  %116 = vmatprep.mubr.bf16.mxu0 0
  %117 = vmatmul.mubr.bf16.gmra.mxu0 %v82
  %v118 = vpop.f32.mrf.mxu0
  %v119 = vadd.f32 %v49, %v118
  %v120 = vpop.f32.mrf.mxu0
  %v121 = vpop.f32.mrf.mxu0
  %v122 = vadd.f32 %v49, %v121
  %v123 = vpop.f32.mrf.mxu0
  %124 = vdwg.mxu0
  %v125 = vmax.f32 %v119, 0.0
  %v126 = vmax.f32 %v122, 0.0
  %v127 = vld [vmem:[#allocation2] sm:$0xff]
  %v128 = vld [vmem:[#allocation2 + $0x8] sm:$0xff]
  %v129 = vpack.c.bf16 %v126, %v125
  %v130 = vld [vmem:[%s3] sm:$0xf]
  %v131 = vld [vmem:[%s3 + $0x4] sm:$0xf]
  %v132 = vld [vmem:[%s3 + $0x8] sm:$0xf]
  %v133 = vld [vmem:[%s3 + $0xc] sm:$0xf]
  %v134 = vld [vmem:[%s3 + $0x10] sm:$0xf]
  %v135 = vld [vmem:[%s3 + $0x14] sm:$0xf]
  %v136 = vld [vmem:[%s3 + $0x18] sm:$0xf]
  %v137 = vld [vmem:[%s3 + $0x1c] sm:$0xf]
  %v138 = vld [vmem:[%s3 + $0x20] sm:$0xf]
  %v139 = vld [vmem:[%s3 + $0x24] sm:$0xf]
  %v140 = vld [vmem:[%s3 + $0x28] sm:$0xf]
  %v141 = vld [vmem:[%s3 + $0x2c] sm:$0xf]
  %v142 = vld [vmem:[%s3 + $0x30] sm:$0xf]
  %v143 = vld [vmem:[%s3 + $0x34] sm:$0xf]
  %v144 = vld [vmem:[%s3 + $0x38] sm:$0xf]
  %v145 = vld [vmem:[%s3 + $0x3c] sm:$0xf]
  %v162 = vunpack.c.l.b16 %v130
  %v163 = vunpack.c.l.b16 %v131
  %v164 = vunpack.c.l.b16 %v132
  %v165 = vunpack.c.l.b16 %v133
  %v166 = vunpack.c.l.b16 %v134
  %v167 = vunpack.c.l.b16 %v135
  %v168 = vunpack.c.l.b16 %v136
  %v169 = vunpack.c.l.b16 %v137
  %v170 = vunpack.c.l.b16 %v138
  %v171 = vunpack.c.l.b16 %v139
  %v172 = vunpack.c.l.b16 %v140
  %v173 = vunpack.c.l.b16 %v141
  %v174 = vunpack.c.l.b16 %v142
  %v175 = vunpack.c.l.b16 %v143
  %v176 = vunpack.c.l.b16 %v144
  %v177 = vunpack.c.l.b16 %v145
  %v178 = vpack.c.b16 %v163, %v162
  %v179 = vpack.c.b16 %v165, %v164
  %v180 = vpack.c.b16 %v167, %v166
  %v181 = vpack.c.b16 %v169, %v168
  %v182 = vpack.c.b16 %v171, %v170
  %v183 = vpack.c.b16 %v173, %v172
  %v184 = vpack.c.b16 %v175, %v174
  %v185 = vpack.c.b16 %v177, %v176
  %194 = vmatprep.subr.bf16.mxu0 0
  %195 = vmatpush1.bf16.msra.mxu0 %v185
  %196 = vmatprep.subr.bf16.mxu0 0
  %197 = vmatpush1.bf16.msra.mxu0 %v184
  %198 = vmatprep.subr.bf16.mxu0 0
  %199 = vmatpush1.bf16.msra.mxu0 %v183
  %200 = vmatprep.subr.bf16.mxu0 0
  %201 = vmatpush1.bf16.msra.mxu0 %v182
  %202 = vmatprep.subr.bf16.mxu0 0
  %203 = vmatpush1.bf16.msra.mxu0 %v181
  %204 = vmatprep.subr.bf16.mxu0 0
  %205 = vmatpush1.bf16.msra.mxu0 %v180
  %206 = vmatprep.subr.bf16.mxu0 0
  %207 = vmatpush1.bf16.msra.mxu0 %v179
  %208 = vmatprep.subr.bf16.mxu0 0
  %209 = vmatpush1.bf16.msra.mxu0 %v178
  %210 = vmatprep.subr.bf16.mxu0 0
  %211 = vmatpush2.bf16.msra.mxu0 0
  %212 = vmatprep.subr.bf16.mxu0 0
  %213 = vmatpush2.bf16.msra.mxu0 0
  %214 = vmatprep.subr.bf16.mxu0 0
  %215 = vmatpush2.bf16.msra.mxu0 0
  %216 = vmatprep.subr.bf16.mxu0 0
  %217 = vmatpush2.bf16.msra.mxu0 0
  %218 = vmatprep.subr.bf16.mxu0 0
  %219 = vmatpush2.bf16.msra.mxu0 0
  %220 = vmatprep.subr.bf16.mxu0 0
  %221 = vmatpush2.bf16.msra.mxu0 0
  %222 = vmatprep.subr.bf16.mxu0 0
  %223 = vmatpush2.bf16.msra.mxu0 0
  %224 = vmatprep.subr.bf16.mxu0 0
  %225 = vmatpush2.bf16.msra.mxu0 0
  %226 = vmatprep.mubr.bf16.mxu0 0
  %227 = vmatmul.mubr.bf16.gmra.mxu0 %v129
  %v228 = vpop.f32.mrf.mxu0
  %v229 = vadd.f32 0.0, %v228
  %v230 = vpop.f32.mrf.mxu0
  %v231 = vpop.f32.mrf.mxu0
  %v232 = vadd.f32 0.0, %v231
  %v233 = vpop.f32.mrf.mxu0
  %234 = vdwg.mxu0
  %v235 = vadd.f32 %v127, %v229
  %v236 = vadd.f32 %v128, %v232
  %237 = vst.msk [vmem:[#allocation2] sm:$0xff] %vm80, %v235
  %238 = vst.msk [vmem:[#allocation2 + $0x8] sm:$0xff] %vm80, %v236
  // Predicated region
  $region34: #{_lambda_.12} parent=0 // pred_check
    %p239 = pneg %p27
  $region35: #{_lambda_.12} parent=0 // pred_check_branch
    %241 = sbr.rel (%p239) target = $region37
  $region36: #{_lambda_.12} parent=0 // pred_region
    %v242 = vld [vmem:[#allocation2] sm:$0xff]
    %v243 = vld [vmem:[#allocation2 + $0x8] sm:$0xff]
    %v244 = vld [vmem:[%s4] sm:$0x1]
    %v246 = vlaneseq
    %v247 = vshrl.u32 %v246, 7
    %v248 = vsub.s32 0, %v247
    %v249 = vrot.slane %v244, %v248
    %v251 = vadd.f32 %v242, %v249
    %v252 = vadd.f32 %v243, %v249
    %v253 = vld [vmem:[%s0] sm:$0xf]
    %v254 = vld [vmem:[%s0 + $0x4] sm:$0xf]
    %v255 = vunpack.c.l.bf16 %v253
    %v256 = vunpack.c.l.bf16 %v254
    %v257 = vadd.f32 %v251, %v255
    %v258 = vadd.f32 %v252, %v256
    %v259 = vsel %vm80, %v257, 0.0
    %260 = vadd.xlane.f32.xlu0 %v259
    %v261 = vpop.xlane.xlu0 %260
    %v262 = vsel %vm80, %v258, 0.0
    %263 = vadd.xlane.f32.xlu0 %v262
    %v264 = vpop.xlane.xlu0 %263
    %v265 = vrcp.pop 64.0
    %v266 = vmul.f32 %v261, %v265
    %v267 = vmul.f32 %v264, %v265
    %v268 = vsub.f32 %v257, %v266
    %v269 = vsub.f32 %v258, %v267
    %v270 = vmul.f32 %v268, %v268
    %v271 = vmul.f32 %v269, %v269
    %v272 = vsel %vm80, %v270, 0.0
    %273 = vadd.xlane.f32.xlu0 %v272
    %v274 = vpop.xlane.xlu0 %273
    %v275 = vsel %vm80, %v271, 0.0
    %276 = vadd.xlane.f32.xlu0 %v275
    %v277 = vpop.xlane.xlu0 %276
    %v278 = vmul.f32 %v274, %v265
    %v279 = vmul.f32 %v277, %v265
    %v280 = vadd.f32 %v278, 1e-05
    %v281 = vadd.f32 %v279, 1e-05
    %v282 = vrsqrt.pop %v280
    %v283 = vrsqrt.pop %v281
    %v284 = vmul.f32 %v268, %v282
    %v285 = vmul.f32 %v269, %v283
    %v286 = vld [vmem:[%s5] sm:$0x1]
    %v288 = vlaneseq
    %v289 = vshrl.u32 %v288, 7
    %v290 = vsub.s32 0, %v289
    %v291 = vrot.slane %v286, %v290
    %v293 = vmul.f32 %v284, %v291
    %v294 = vmul.f32 %v285, %v291
    %v295 = vld [vmem:[%s6] sm:$0x1]
    %v297 = vlaneseq
    %v298 = vshrl.u32 %v297, 7
    %v299 = vsub.s32 0, %v298
    %v300 = vrot.slane %v295, %v299
    %v302 = vadd.f32 %v293, %v300
    %v303 = vadd.f32 %v294, %v300
    %v304 = vpack.c.bf16 %v303, %v302
    %v306 = vunpack.c.l.b16 %v304
    %v307 = vunpack.c.h.b16 %v304
    %v308 = vpack.c.b16 %v306, %v306
    %v309 = vpack.c.b16 %v307, %v307
    %vm312 = vcmask 519168
    %313 = vst.msk [vmem:[%s7] sm:$0xf] %vm312, %v308
    %314 = vst.msk [vmem:[%s7 + $0x4] sm:$0xf] %vm312, %v309
  $region37: #{_lambda_.12} parent=0 // pred_fallthru
    _
  // Predicated region
  $region38: #{_lambda_.12} parent=0 // pred_check
    _
  $region39: #{_lambda_.12} parent=0 // pred_check_branch
    %316 = sbr.rel (0) target = $region41
  $region40: #{_lambda_.12} parent=0 // pred_region
    _
  $region41: #{_lambda_.12} parent=0 // pred_fallthru
    _
  // Predicated region
  $region42: #{_lambda_.12} parent=0 // pred_check
    _
  $region43: #{_lambda_.12} parent=0 // pred_check_branch
    %318 = sbr.rel (0) target = $region45
  $region44: #{_lambda_.12} parent=0 // pred_region
    _
  $region45: #{_lambda_.12} parent=0 // pred_fallthru
    _

// kernel: _lambda_.13
$region0: #{_lambda_.13}
  #allocation0 [shape = 'u32[]', space=smem, size = 0x4, offset = 0x4, fixed_abs, tag = 'smem constant byte address 0x4 - core index']
  #allocation1 [shape = 'u32[144,128]{1,0:T(1,128)}', space=vmem, size = 0x12000, scoped, tag = 'internal scratch']
  %s0 = inlined_call_operand.vmem [shape: bf16[16,64], index: 0, kind: input, shape index: {}]
  %s1 = inlined_call_operand.vmem [shape: bf16[12,64,16], index: 1, kind: input, shape index: {}]
  %s2 = inlined_call_operand.vmem [shape: f32[12,1,16], index: 2, kind: input, shape index: {}]
  %s3 = inlined_call_operand.vmem [shape: bf16[12,16,16], index: 3, kind: output, shape index: {}]
  %s4 = sld [smem:[#allocation0]]
  $region45: #{_lambda_.13} parent=0
    _
  %s6 = ssub.s32 1, %s4
  %s7 = scalar_select 0, %s6, %s4
  loop: start=0, step=1, limit=14
  $region2: #{_lambda_.13} parent=0 // loop_pre_header
    _
  $region3: #{_lambda_.13} parent=0 // loop_header
    %s9 = sphi 0, %s13
    %p10 = scmp.ge.s32.totalorder %s9, 14
    %s16 = sphi 0, %s28
    %s17 = sphi 0, %s24
    %s18 = sphi 0, %s16
    %s19 = sphi 0, %s17
    %s20 = sphi 0, %s18
    %s21 = sphi 0, %s19
    %s31 = sphi 0, %s33
    %s34 = sphi 0, %s31
    %s35 = sphi 0, %s34
    %s51 = sphi 0, %s35
    %s57 = sphi 0, %s59
    %s60 = sphi 0, %s57
    %s61 = sphi 0, %s60
    %s77 = sphi 0, %s61
    %s83 = sphi 0, %s85
    %s86 = sphi 0, %s83
    %s87 = sphi 0, %s86
    %s103 = sphi 0, %s87
    %s111 = sphi 0, %s113
    %s114 = sphi 0, %s111
    %s115 = sphi 0, %s114
    %s131 = sphi 0, %s115
  $region4: #{_lambda_.13} parent=0 // loop_header_branch
    %12 = sbr.rel (%p10) target = $region8
  $region5: #{_lambda_.13} parent=0 // loop_body
    %s14 = ssub.s32 %s9, 1
    %s15 = ssub.s32 %s9, 2
    %s22 = sadd.s32 1, %s17
    %p23 = scmp.ge.s32.totalorder %s22, 12
    %s24 = scalar_select %p23, 0, %s22
    %s25 = sadd.s32 1, %s16
    %s26 = scalar_select %p23, %s25, %s16
    %p27 = scmp.ge.s32.totalorder %s26, 1
    %s28 = scalar_select %p27, 0, %s26
    %s29 = ssub.s32 %s16, %s28
    %p30 = scmp.eq.s32.totalorder %s29, 0
    %s32 = sadd.s32 %s31, 1
    %s33 = scalar_select %p30, %s31, %s32
    %p36 = pneg %p30
    %p37 = scmp.eq.s32.totalorder %s9, 11
    %p38 = por %p36, %p37
    %p39 = scmp.ne.s32.totalorder %s31, %s34
    %p40 = scmp.eq.s32.totalorder %s9, 0
    %p41 = por %p39, %p40
    %p42 = scmp.ne.s32.totalorder %s31, %s34
    %p43 = scmp.eq.s32.totalorder %s14, 11
    %p44 = por %p42, %p43
    %p45 = scmp.ne.s32.totalorder %s34, %s35
    %p46 = scmp.eq.s32.totalorder %s14, 0
    %p47 = por %p45, %p46
    %p48 = scmp.ne.s32.totalorder %s34, %s35
    %p49 = scmp.eq.s32.totalorder %s15, 11
    %p50 = por %p48, %p49
    %p52 = scmp.ne.s32.totalorder %s35, %s51
    %p53 = scmp.eq.s32.totalorder %s15, 0
    %p54 = por %p52, %p53
    %s55 = ssub.s32 %s17, %s24
    %p56 = scmp.eq.s32.totalorder %s55, 0
    %s58 = sadd.s32 %s57, 1
    %s59 = scalar_select %p56, %s57, %s58
    %p62 = pneg %p56
    %p63 = scmp.eq.s32.totalorder %s9, 11
    %p64 = por %p62, %p63
    %p65 = scmp.ne.s32.totalorder %s57, %s60
    %p66 = scmp.eq.s32.totalorder %s9, 0
    %p67 = por %p65, %p66
    %p68 = scmp.ne.s32.totalorder %s57, %s60
    %p69 = scmp.eq.s32.totalorder %s14, 11
    %p70 = por %p68, %p69
    %p71 = scmp.ne.s32.totalorder %s60, %s61
    %p72 = scmp.eq.s32.totalorder %s14, 0
    %p73 = por %p71, %p72
    %p74 = scmp.ne.s32.totalorder %s60, %s61
    %p75 = scmp.eq.s32.totalorder %s15, 11
    %p76 = por %p74, %p75
    %p78 = scmp.ne.s32.totalorder %s61, %s77
    %p79 = scmp.eq.s32.totalorder %s15, 0
    %p80 = por %p78, %p79
    %s81 = ssub.s32 %s17, %s24
    %p82 = scmp.eq.s32.totalorder %s81, 0
    %s84 = sadd.s32 %s83, 1
    %s85 = scalar_select %p82, %s83, %s84
    %p88 = pneg %p82
    %p89 = scmp.eq.s32.totalorder %s9, 11
    %p90 = por %p88, %p89
    %p91 = scmp.ne.s32.totalorder %s83, %s86
    %p92 = scmp.eq.s32.totalorder %s9, 0
    %p93 = por %p91, %p92
    %p94 = scmp.ne.s32.totalorder %s83, %s86
    %p95 = scmp.eq.s32.totalorder %s14, 11
    %p96 = por %p94, %p95
    %p97 = scmp.ne.s32.totalorder %s86, %s87
    %p98 = scmp.eq.s32.totalorder %s14, 0
    %p99 = por %p97, %p98
    %p100 = scmp.ne.s32.totalorder %s86, %s87
    %p101 = scmp.eq.s32.totalorder %s15, 11
    %p102 = por %p100, %p101
    %p104 = scmp.ne.s32.totalorder %s87, %s103
    %p105 = scmp.eq.s32.totalorder %s15, 0
    %p106 = por %p104, %p105
    %s107 = ssub.s32 %s17, %s24
    %s108 = ssub.s32 %s16, %s28
    %s109 = sor.u32 %s107, %s108
    %p110 = scmp.eq.s32.totalorder %s109, 0
    %s112 = sadd.s32 %s111, 1
    %s113 = scalar_select %p110, %s111, %s112
    %p116 = pneg %p110
    %p117 = scmp.eq.s32.totalorder %s9, 11
    %p118 = por %p116, %p117
    %p119 = scmp.ne.s32.totalorder %s111, %s114
    %p120 = scmp.eq.s32.totalorder %s9, 0
    %p121 = por %p119, %p120
    %p122 = scmp.ne.s32.totalorder %s111, %s114
    %p123 = scmp.eq.s32.totalorder %s14, 11
    %p124 = por %p122, %p123
    %p125 = scmp.ne.s32.totalorder %s114, %s115
    %p126 = scmp.eq.s32.totalorder %s14, 0
    %p127 = por %p125, %p126
    %p128 = scmp.ne.s32.totalorder %s114, %s115
    %p129 = scmp.eq.s32.totalorder %s15, 11
    %p130 = por %p128, %p129
    %p132 = scmp.ne.s32.totalorder %s115, %s131
    %p133 = scmp.eq.s32.totalorder %s15, 0
    %p134 = por %p132, %p133
    %p135 = scmp.le.s32.totalorder 1, %s9
    %p136 = scmp.lt.s32.totalorder %s9, 13
    %p137 = pnand %p135, %p136
    %p138 = pneg %p137
    // Predicated region
    $region9: #{_lambda_.13} parent=5 // pred_check
      _
    $region10: #{_lambda_.13} parent=5 // pred_check_branch
      %140 = sbr.rel (%p137) target = $region12
    $region11: #{_lambda_.13} parent=5 // pred_region
      %s141 = ssub.s32 %s9, 1
      // Predicated region
      $region13: #{_lambda_.13} parent=11 // pred_check
        %p142 = pneg %p47
      $region14: #{_lambda_.13} parent=11 // pred_check_branch
        %144 = sbr.rel (%p142) target = $region16
      $region15: #{_lambda_.13} parent=11 // pred_region
        %s145 = smul.u32 2, %s18
        %p146 = scmp.lt.s32.totalorder %s145, 1
        %s147 = scalar_select %p146, %s145, 1
        %s148 = smul.addr %s147, 4
        %s149 = scalar_lea.vmem %s0, %s148
        %s150 = smul.u32 2, %s18
      $region16: #{_lambda_.13} parent=11 // pred_fallthru
        _
    $region12: #{_lambda_.13} parent=5 // pred_fallthru
      _
    %p151 = scmp.lt.s32.totalorder %s9, 12
    // Predicated region
    $region17: #{_lambda_.13} parent=5 // pred_check
      %p152 = pneg %p151
    $region18: #{_lambda_.13} parent=5 // pred_check_branch
      %154 = sbr.rel (%p152) target = $region20
    $region19: #{_lambda_.13} parent=5 // pred_region
      // Predicated region
      $region21: #{_lambda_.13} parent=19 // pred_check
        %p155 = pneg %p67
      $region22: #{_lambda_.13} parent=19 // pred_check_branch
        %157 = sbr.rel (%p155) target = $region24
      $region23: #{_lambda_.13} parent=19 // pred_region
        %p158 = scmp.lt.s32.totalorder %s17, 11
        %s159 = scalar_select %p158, %s17, 11
        %s160 = smul.addr %s159, 8
        %s161 = smul.addr %s160, 4
        %s162 = scalar_lea.vmem %s1, %s161
      $region24: #{_lambda_.13} parent=19 // pred_fallthru
        _
      // Predicated region
      $region25: #{_lambda_.13} parent=19 // pred_check
        %p163 = pneg %p93
      $region26: #{_lambda_.13} parent=19 // pred_check_branch
        %165 = sbr.rel (%p163) target = $region28
      $region27: #{_lambda_.13} parent=19 // pred_region
        %p166 = scmp.lt.s32.totalorder %s17, 11
        %s167 = scalar_select %p166, %s17, 11
        %s168 = scalar_lea.vmem %s2, %s167
      $region28: #{_lambda_.13} parent=19 // pred_fallthru
        _
    $region20: #{_lambda_.13} parent=5 // pred_fallthru
      _
    %p169 = scmp.le.s32.totalorder 1, %s9
    %p170 = scmp.lt.s32.totalorder %s9, 13
    %p171 = pnand %p169, %p170
    %p172 = pneg %p171
    // Predicated region
    $region29: #{_lambda_.13} parent=5 // pred_check
      _
    $region30: #{_lambda_.13} parent=5 // pred_check_branch
      %174 = sbr.rel (%p171) target = $region32
    $region31: #{_lambda_.13} parent=5 // pred_region
      %s175 = ssub.s32 %s9, 1
      %s176 = smul.u32 2, %s18
      %p177 = scmp.lt.s32.totalorder %s176, 1
      %s178 = scalar_select %p177, %s176, 1
      %s179 = smul.addr %s178, 4
      %s180 = scalar_lea.vmem %s0, %s179
      %p181 = pneg %p47
      %p182 = pneg %p44
      %p183 = scmp.lt.s32.totalorder %s19, 11
      %s184 = scalar_select %p183, %s19, 11
      %s185 = smul.addr %s184, 8
      %s186 = smul.addr %s185, 4
      %s187 = scalar_lea.vmem %s1, %s186
      %p188 = pneg %p73
      %p189 = pneg %p70
      %p190 = scmp.lt.s32.totalorder %s19, 11
      %s191 = scalar_select %p190, %s19, 11
      %s192 = scalar_lea.vmem %s2, %s191
      %p193 = pneg %p99
      %p194 = pneg %p96
      %p195 = pneg %p127
      %p196 = pneg %p124
      %s197 = smul.u32 2, %s18
      %p198 = scmp.lt.s32.totalorder %s19, 11
      %s199 = scalar_select %p198, %s19, 11
      %p200 = scmp.lt.s32.totalorder %s197, 1
      %s201 = scalar_select %p200, %s197, 1
      %s202 = smul.addr %s199, 2
      %s203 = sadd.s32 %s201, %s202
      %s204 = smul.addr %s203, 4
      %s205 = scalar_lea.vmem %s3, %s204
      %s206 = smul.u32 2, %s18
      %p207 = scmp.lt.s32.totalorder %s206, 1
      %s208 = scalar_select %p207, %s206, 1
      %s209 = smul.addr %s208, 4
      %s210 = scalar_lea.vmem %s0, %s209
      %s211 = smul.u32 2, %s18
      %p212 = scmp.lt.s32.totalorder %s19, 11
      %s213 = scalar_select %p212, %s19, 11
      %s214 = smul.addr %s213, 8
      %s215 = smul.addr %s214, 4
      %s216 = scalar_lea.vmem %s1, %s215
      %p217 = scmp.lt.s32.totalorder %s19, 11
      %s218 = scalar_select %p217, %s19, 11
      %s219 = scalar_lea.vmem %s2, %s218
      %s220 = smul.u32 2, %s18
      %p221 = scmp.lt.s32.totalorder %s19, 11
      %s222 = scalar_select %p221, %s19, 11
      %p223 = scmp.lt.s32.totalorder %s220, 1
      %s224 = scalar_select %p223, %s220, 1
      %s225 = smul.addr %s222, 2
      %s226 = sadd.s32 %s224, %s225
      %s227 = smul.addr %s226, 4
      %s228 = scalar_lea.vmem %s3, %s227
      %s229 = smul.u32 2, %s18
      %v231 = vld [vmem:[%s210] sm:$0xf]
      %v232 = vld [vmem:[%s210 + $0x4] sm:$0xf]
      %v233 = vld [vmem:[%s216] sm:$0xf]
      %v234 = vld [vmem:[%s216 + $0x4] sm:$0xf]
      %v235 = vld [vmem:[%s216 + $0x8] sm:$0xf]
      %v236 = vld [vmem:[%s216 + $0xc] sm:$0xf]
      %v237 = vld [vmem:[%s216 + $0x10] sm:$0xf]
      %v238 = vld [vmem:[%s216 + $0x14] sm:$0xf]
      %v239 = vld [vmem:[%s216 + $0x18] sm:$0xf]
      %v240 = vld [vmem:[%s216 + $0x1c] sm:$0xf]
      %v241 = vld [vmem:[%s219] sm:$0x1]
      %v243 = vlaneseq
      %v244 = vshrl.u32 %v243, 7
      %v245 = vsub.s32 0, %v244
      %v246 = vrot.slane %v241, %v245
      %v250 = vunpack.c.l.b16 %v231
      %v251 = vunpack.c.l.b16 %v232
      %v252 = vpack.c.b16 %v251, %v250
      %v261 = vunpack.c.l.b16 %v233
      %v262 = vunpack.c.l.b16 %v234
      %v263 = vunpack.c.l.b16 %v235
      %v264 = vunpack.c.l.b16 %v236
      %v265 = vunpack.c.l.b16 %v237
      %v266 = vunpack.c.l.b16 %v238
      %v267 = vunpack.c.l.b16 %v239
      %v268 = vunpack.c.l.b16 %v240
      %v269 = vpack.c.b16 %v262, %v261
      %v270 = vpack.c.b16 %v264, %v263
      %v271 = vpack.c.b16 %v266, %v265
      %v272 = vpack.c.b16 %v268, %v267
      %vm277 = vcmask 523264
      %v279 = vsel %vm277, %v252, 0
      %281 = vmatprep.subr.bf16.mxu0 0
      %282 = vmatpush1.bf16.msra.mxu0 0
      %283 = vmatprep.subr.bf16.mxu0 0
      %284 = vmatpush1.bf16.msra.mxu0 0
      %285 = vmatprep.subr.bf16.mxu0 0
      %286 = vmatpush1.bf16.msra.mxu0 0
      %287 = vmatprep.subr.bf16.mxu0 0
      %288 = vmatpush1.bf16.msra.mxu0 0
      %289 = vmatprep.subr.bf16.mxu0 0
      %290 = vmatpush1.bf16.msra.mxu0 %v272
      %291 = vmatprep.subr.bf16.mxu0 0
      %292 = vmatpush1.bf16.msra.mxu0 %v271
      %293 = vmatprep.subr.bf16.mxu0 0
      %294 = vmatpush1.bf16.msra.mxu0 %v270
      %295 = vmatprep.subr.bf16.mxu0 0
      %296 = vmatpush1.bf16.msra.mxu0 %v269
      %297 = vmatprep.subr.bf16.mxu0 0
      %298 = vmatpush2.bf16.msra.mxu0 0
      %299 = vmatprep.subr.bf16.mxu0 0
      %300 = vmatpush2.bf16.msra.mxu0 0
      %301 = vmatprep.subr.bf16.mxu0 0
      %302 = vmatpush2.bf16.msra.mxu0 0
      %303 = vmatprep.subr.bf16.mxu0 0
      %304 = vmatpush2.bf16.msra.mxu0 0
      %305 = vmatprep.subr.bf16.mxu0 0
      %306 = vmatpush2.bf16.msra.mxu0 0
      %307 = vmatprep.subr.bf16.mxu0 0
      %308 = vmatpush2.bf16.msra.mxu0 0
      %309 = vmatprep.subr.bf16.mxu0 0
      %310 = vmatpush2.bf16.msra.mxu0 0
      %311 = vmatprep.subr.bf16.mxu0 0
      %312 = vmatpush2.bf16.msra.mxu0 0
      %313 = vmatprep.mubr.bf16.mxu0 0
      %314 = vmatmul.mubr.bf16.gmra.mxu0 %v279
      %v315 = vpop.f32.mrf.mxu0
      %v316 = vadd.f32 %v246, %v315
      %v317 = vpop.f32.mrf.mxu0
      %v318 = vpop.f32.mrf.mxu0
      %v319 = vadd.f32 %v246, %v318
      %v320 = vpop.f32.mrf.mxu0
      %321 = vdwg.mxu0
      %v322 = vpack.c.bf16 %v319, %v316
      %v324 = vunpack.c.l.b16 %v322
      %v325 = vunpack.c.h.b16 %v322
      %v326 = vpack.c.b16 %v324, %v324
      %v327 = vpack.c.b16 %v325, %v325
      %vm330 = vcmask 125952
      %331 = vst.msk [vmem:[%s228] sm:$0xf] %vm330, %v326
      %332 = vst.msk [vmem:[%s228 + $0x4] sm:$0xf] %vm330, %v327
      %s333 = smul.u32 2, %s18
      %p334 = scmp.lt.s32.totalorder %s19, 11
      %s335 = scalar_select %p334, %s19, 11
      %p336 = scmp.lt.s32.totalorder %s333, 1
      %s337 = scalar_select %p336, %s333, 1
      %s338 = smul.addr %s335, 2
      %s339 = sadd.s32 %s337, %s338
      %s340 = smul.addr %s339, 4
      %s341 = scalar_lea.vmem %s3, %s340
      // Predicated region
      $region33: #{_lambda_.13} parent=31 // pred_check
        %p342 = pneg %p124
      $region34: #{_lambda_.13} parent=31 // pred_check_branch
        %344 = sbr.rel (%p342) target = $region36
      $region35: #{_lambda_.13} parent=31 // pred_region
        %s345 = smul.u32 2, %s18
      $region36: #{_lambda_.13} parent=31 // pred_fallthru
        _
    $region32: #{_lambda_.13} parent=5 // pred_fallthru
      _
    %p346 = scmp.le.s32.totalorder 2, %s9
    // Predicated region
    $region37: #{_lambda_.13} parent=5 // pred_check
      %p347 = pneg %p346
    $region38: #{_lambda_.13} parent=5 // pred_check_branch
      %349 = sbr.rel (%p347) target = $region40
    $region39: #{_lambda_.13} parent=5 // pred_region
      %s350 = ssub.s32 %s9, 2
      // Predicated region
      $region41: #{_lambda_.13} parent=39 // pred_check
        %p351 = pneg %p130
      $region42: #{_lambda_.13} parent=39 // pred_check_branch
        %353 = sbr.rel (%p351) target = $region44
      $region43: #{_lambda_.13} parent=39 // pred_region
        %s354 = smul.u32 2, %s20
        %p355 = scmp.lt.s32.totalorder %s21, 11
        %s356 = scalar_select %p355, %s21, 11
        %p357 = scmp.lt.s32.totalorder %s354, 1
        %s358 = scalar_select %p357, %s354, 1
        %s359 = smul.addr %s356, 2
        %s360 = sadd.s32 %s358, %s359
        %s361 = smul.addr %s360, 4
        %s362 = scalar_lea.vmem %s3, %s361
      $region44: #{_lambda_.13} parent=39 // pred_fallthru
        _
    $region40: #{_lambda_.13} parent=5 // pred_fallthru
      _
  $region6: #{_lambda_.13} parent=0 // loop_footer
    %s13 = sadd.s32 1, %s9
  $region7: #{_lambda_.13} parent=0 // loop_footer_branch
    %8 = sbr.rel target = $region3
  $region8: #{_lambda_.13} parent=0 // loop_exit
    _

// kernel: _lambda_.17
$region0: #{_lambda_.17}
  #allocation0 [shape = 'u32[]', space=smem, size = 0x4, offset = 0x4, fixed_abs, tag = 'smem constant byte address 0x4 - core index']
  #allocation1 [shape = 'u32[144,128]{1,0:T(1,128)}', space=vmem, size = 0x12000, scoped, tag = 'internal scratch']
  #allocation2 [shape = 'f32[16,128]{1,0:T(8,128)}', space=vmem, size = 0x2000, scoped, tag = 'scratch operand']
  %s0 = inlined_call_operand.vmem [shape: bf16[16,64], index: 0, kind: input, shape index: {}]
  %s1 = inlined_call_operand.vmem [shape: bf16[64,128], index: 1, kind: input, shape index: {}]
  %s2 = inlined_call_operand.vmem [shape: f32[1,128], index: 2, kind: input, shape index: {}]
  %s3 = inlined_call_operand.hbm [shape: f32[16,128], index: 3, kind: output, shape index: {}]
  %s4 = sld [smem:[#allocation0]]
  $region30: #{_lambda_.17} parent=0
    _
  %s6 = ssub.s32 1, %s4
  %s7 = scalar_select 0, %s6, %s4
  $region1: #{_lambda_.17} parent=0
    #allocation3 [shape = 'u8[8192]{0}', space=vmem, size = 0x2000, scoped, tag = 'output window, operand 0, single buffered']
    #allocation4 [shape = 's32[1]{0}', space=sflag, size = 0x4, scoped, tag = 'scoped memory for _lambda_.17']
    %8 = vsyncpa [#allocation4], 0
    // Predicated region
    $region2: #{_lambda_.17} parent=1 // pred_check
      _
    $region3: #{_lambda_.17} parent=1 // pred_check_branch
      %10 = sbr.rel (0) target = $region5
    $region4: #{_lambda_.17} parent=1 // pred_region
      _
    $region5: #{_lambda_.17} parent=1 // pred_fallthru
      _
    // Predicated region
    $region6: #{_lambda_.17} parent=1 // pred_check
      _
    $region7: #{_lambda_.17} parent=1 // pred_check_branch
      %12 = sbr.rel (0) target = $region9
    $region8: #{_lambda_.17} parent=1 // pred_region
      _
    $region9: #{_lambda_.17} parent=1 // pred_fallthru
      _
    // Predicated region
    $region10: #{_lambda_.17} parent=1 // pred_check
      _
    $region11: #{_lambda_.17} parent=1 // pred_check_branch
      %14 = sbr.rel (0) target = $region13
    $region12: #{_lambda_.17} parent=1 // pred_region
      _
    $region13: #{_lambda_.17} parent=1 // pred_fallthru
      _
    %p16 = scmp.eq.s32.totalorder 0, 0
    // Predicated region
    $region14: #{_lambda_.17} parent=1 // pred_check
      %p17 = pneg %p16
    $region15: #{_lambda_.17} parent=1 // pred_check_branch
      %19 = sbr.rel (%p17) target = $region17
    $region16: #{_lambda_.17} parent=1 // pred_region
      %20 = vst [vmem:[#allocation2] sm:$0xff] 0.0
      %21 = vst [vmem:[#allocation2 + $0x8] sm:$0xff] 0.0
    $region17: #{_lambda_.17} parent=1 // pred_fallthru
      _
    %v22 = vld [vmem:[#allocation2] sm:$0xff]
    %v23 = vld [vmem:[#allocation2 + $0x8] sm:$0xff]
    %v24 = vld [vmem:[%s0] sm:$0xf]
    %v25 = vld [vmem:[%s0 + $0x4] sm:$0xf]
    %v26 = vld [vmem:[%s1] sm:$0xf]
    %v27 = vld [vmem:[%s1 + $0x4] sm:$0xf]
    %v28 = vld [vmem:[%s1 + $0x8] sm:$0xf]
    %v29 = vld [vmem:[%s1 + $0xc] sm:$0xf]
    %v30 = vld [vmem:[%s1 + $0x10] sm:$0xf]
    %v31 = vld [vmem:[%s1 + $0x14] sm:$0xf]
    %v32 = vld [vmem:[%s1 + $0x18] sm:$0xf]
    %v33 = vld [vmem:[%s1 + $0x1c] sm:$0xf]
    %v36 = vunpack.c.l.b16 %v24
    %v37 = vunpack.c.l.b16 %v25
    %v38 = vpack.c.b16 %v37, %v36
    %v47 = vunpack.c.l.b16 %v26
    %v48 = vunpack.c.l.b16 %v27
    %v49 = vunpack.c.l.b16 %v28
    %v50 = vunpack.c.l.b16 %v29
    %v51 = vunpack.c.l.b16 %v30
    %v52 = vunpack.c.l.b16 %v31
    %v53 = vunpack.c.l.b16 %v32
    %v54 = vunpack.c.l.b16 %v33
    %v55 = vpack.c.b16 %v48, %v47
    %v56 = vpack.c.b16 %v50, %v49
    %v57 = vpack.c.b16 %v52, %v51
    %v58 = vpack.c.b16 %v54, %v53
    %vm63 = vcmask 523264
    %v65 = vsel %vm63, %v38, 0
    %67 = vmatprep.subr.bf16.mxu0 0
    %68 = vmatpush1.bf16.msra.mxu0 0
    %69 = vmatprep.subr.bf16.mxu0 0
    %70 = vmatpush1.bf16.msra.mxu0 0
    %71 = vmatprep.subr.bf16.mxu0 0
    %72 = vmatpush1.bf16.msra.mxu0 0
    %73 = vmatprep.subr.bf16.mxu0 0
    %74 = vmatpush1.bf16.msra.mxu0 0
    %75 = vmatprep.subr.bf16.mxu0 0
    %76 = vmatpush1.bf16.msra.mxu0 %v58
    %77 = vmatprep.subr.bf16.mxu0 0
    %78 = vmatpush1.bf16.msra.mxu0 %v57
    %79 = vmatprep.subr.bf16.mxu0 0
    %80 = vmatpush1.bf16.msra.mxu0 %v56
    %81 = vmatprep.subr.bf16.mxu0 0
    %82 = vmatpush1.bf16.msra.mxu0 %v55
    %83 = vmatprep.subr.bf16.mxu0 0
    %84 = vmatpush2.bf16.msra.mxu0 0
    %85 = vmatprep.subr.bf16.mxu0 0
    %86 = vmatpush2.bf16.msra.mxu0 0
    %87 = vmatprep.subr.bf16.mxu0 0
    %88 = vmatpush2.bf16.msra.mxu0 0
    %89 = vmatprep.subr.bf16.mxu0 0
    %90 = vmatpush2.bf16.msra.mxu0 0
    %91 = vmatprep.subr.bf16.mxu0 0
    %92 = vmatpush2.bf16.msra.mxu0 0
    %93 = vmatprep.subr.bf16.mxu0 0
    %94 = vmatpush2.bf16.msra.mxu0 0
    %95 = vmatprep.subr.bf16.mxu0 0
    %96 = vmatpush2.bf16.msra.mxu0 0
    %97 = vmatprep.subr.bf16.mxu0 0
    %98 = vmatpush2.bf16.msra.mxu0 0
    %99 = vmatprep.mubr.bf16.mxu0 0
    %100 = vmatmul.mubr.bf16.gmra.mxu0 %v65
    %v101 = vpop.f32.mrf.mxu0
    %v102 = vadd.f32 0.0, %v101
    %v103 = vpop.f32.mrf.mxu0
    %v104 = vpop.f32.mrf.mxu0
    %v105 = vadd.f32 0.0, %v104
    %v106 = vpop.f32.mrf.mxu0
    %107 = vdwg.mxu0
    %v108 = vadd.f32 %v22, %v102
    %v109 = vadd.f32 %v23, %v105
    %110 = vst [vmem:[#allocation2] sm:$0xff] %v108
    %111 = vst [vmem:[#allocation2 + $0x8] sm:$0xff] %v109
    // Predicated region
    $region18: #{_lambda_.17} parent=1 // pred_check
      %p112 = pneg %p16
    $region19: #{_lambda_.17} parent=1 // pred_check_branch
      %114 = sbr.rel (%p112) target = $region21
    $region20: #{_lambda_.17} parent=1 // pred_region
      %v115 = vld [vmem:[#allocation2] sm:$0xff]
      %v116 = vld [vmem:[#allocation2 + $0x8] sm:$0xff]
      %v117 = vld [vmem:[%s2] sm:$0x1]
      %v119 = vlaneseq
      %v120 = vshrl.u32 %v119, 7
      %v121 = vsub.s32 0, %v120
      %v122 = vrot.slane %v117, %v121
      %v124 = vadd.f32 %v115, %v122
      %v125 = vadd.f32 %v116, %v122
      %126 = vst [vmem:[#allocation3] sm:$0xff] %v124
      %127 = vst [vmem:[#allocation3 + $0x8] sm:$0xff] %v125
    $region21: #{_lambda_.17} parent=1 // pred_fallthru
      _
    // Predicated region
    $region22: #{_lambda_.17} parent=1 // pred_check
      _
    $region23: #{_lambda_.17} parent=1 // pred_check_branch
      %129 = sbr.rel (0) target = $region25
    $region24: #{_lambda_.17} parent=1 // pred_region
      %s131 = ssub.s32 256, 256
      %132 = vsyncadd [#allocation4], %s131
      %s133 = sshll.u32 [#allocation3], 4
      %s134 = int_to_ptr.vmem [resolvable:$true] %s133
      %139 = dma.vmem_to_hbm [thread:$0]  %s134, 256, %s3, [#allocation4], 128, 128, 8
    $region25: #{_lambda_.17} parent=1 // pred_fallthru
      _
    // Predicated region
    $region26: #{_lambda_.17} parent=1 // pred_check
      _
    $region27: #{_lambda_.17} parent=1 // pred_check_branch
      %141 = sbr.rel (0) target = $region29
    $region28: #{_lambda_.17} parent=1 // pred_region
      %142 = dma.done [#allocation4], 256
    $region29: #{_lambda_.17} parent=1 // pred_fallthru
      _
    %143 = vsyncpa [#allocation4], 1

</llo_original>
